<compile_context>
chip_gen: v6e
topology: v6e:2x2x1
jax: 0.10.0
libtpu: 0.0.40
codegen_flags: <defaults>
</compile_context>

<pallas_src>
import jax
import jax.numpy as jnp
from jax import lax
from jax.experimental import pallas as pl
from jax.experimental.pallas import tpu as pltpu

_EPS = 1e-8
_RGB_W = (0.299, 0.587, 0.114)   # kornia rgb_to_grayscale weights
_NPARAM = 16                     # per-image scalar slots (padded)
_STRIP = 8                       # sublane-aligned row strip for pointwise phase


def _rgb_to_hsv(r, g, b):
    maxc = jnp.maximum(jnp.maximum(r, g), b)
    minc = jnp.minimum(jnp.minimum(r, g), b)
    v = maxc
    delta = maxc - minc
    # divides -> EUP reciprocal (approx): effectively free on a VALU-bound kernel.
    s = delta * pl.reciprocal(jnp.maximum(maxc, _EPS), approx=True)
    inv_d = pl.reciprocal(jnp.where(delta > _EPS, delta, 1.0), approx=True)
    rc = (maxc - r) * inv_d
    gc = (maxc - g) * inv_d
    bc = (maxc - b) * inv_d
    h = jnp.where(maxc == r, bc - gc,
                  jnp.where(maxc == g, 2.0 + rc - bc, 4.0 + gc - rc))
    h = jnp.where(delta > _EPS, h * (1.0 / 6.0), 0.0)   # in (-1/6, 5/6]
    return h, s, v


def _hsv_to_rgb(h, s, v):
    # Closed-form piecewise ramps: r'=clip(|6h-3|-1), g'=clip(2-|6h-2|), b'=clip(2-|6h-4|)
    h6 = h * 6.0
    r1 = jnp.clip(jnp.abs(h6 - 3.0) - 1.0, 0.0, 1.0)
    g1 = jnp.clip(2.0 - jnp.abs(h6 - 2.0), 0.0, 1.0)
    b1 = jnp.clip(2.0 - jnp.abs(h6 - 4.0), 0.0, 1.0)
    r = ((r1 - 1.0) * s + 1.0) * v
    g = ((g1 - 1.0) * s + 1.0) * v
    b = ((b1 - 1.0) * s + 1.0) * v
    return r, g, b


def _make_kernel(H, W):
    nstrips = H // _STRIP

    def kernel(op_ref, params_ref, x_ref, mw_ref, mh_ref, o_ref):
        # params_ref: SMEM (B*16,) f32 per image:
        #  [jit_on, brightness, contrast, saturation, hue, gray_on, flip_on,
        #   blur_on, a_r, a_g, a_b, b_r, b_g, b_b, pad, pad]
        #  with a_c = 1/std_c (or 1) and b_c = -mean_c/std_c (or 0).
        off = pl.program_id(0) * _NPARAM
        jit_f = params_ref[off + 0]
        bright = params_ref[off + 1]
        contrast = params_ref[off + 2]
        sat = params_ref[off + 3]
        hue = params_ref[off + 4]
        gray_f = params_ref[off + 5]
        flip_f = params_ref[off + 6]
        blur_f = params_ref[off + 7]
        a_r = params_ref[off + 8]
        a_g = params_ref[off + 9]
        a_b = params_ref[off + 10]
        b_r = params_ref[off + 11]
        b_g = params_ref[off + 12]
        b_b = params_ref[off + 13]
        one_m_gray = 1.0 - gray_f

        # --- pointwise phase: jitter -> grayscale -> normalize, single write ---
        # TODO(synk): jitter sub-ops use a fixed order (brightness, contrast,
        # saturation, hue) with torchvision-style formulas instead of kornia's
        # random permutation / legacy formulas.
        @pl.when(jit_f > 0.5)
        def _():
            # pass 1 (strip-mined): mean gray of brightness-adjusted image.
            def mean_body(s, acc):
                row = pl.multiple_of(s * _STRIP, _STRIP)
                r = jnp.clip(x_ref[0, pl.ds(row, _STRIP), :] * bright, 0.0, 1.0)
                g = jnp.clip(x_ref[0, pl.ds(H + row, _STRIP), :] * bright, 0.0, 1.0)
                b = jnp.clip(x_ref[0, pl.ds(2 * H + row, _STRIP), :] * bright, 0.0, 1.0)
                return acc + jnp.sum(_RGB_W[0] * r + _RGB_W[1] * g + _RGB_W[2] * b)

            tot = lax.fori_loop(0, nstrips, mean_body, jnp.float32(0.0))
            mc = tot * (1.0 / (H * W)) * (1.0 - contrast)
            oms = 1.0 - sat

            # pass 2 (strip-mined): full chain in vregs, one store per strip.
            def strip_body(s, carry):
                row = pl.multiple_of(s * _STRIP, _STRIP)
                r = x_ref[0, pl.ds(row, _STRIP), :]
                g = x_ref[0, pl.ds(H + row, _STRIP), :]
                b = x_ref[0, pl.ds(2 * H + row, _STRIP), :]
                # brightness (multiplicative blend with black, clamp)
                r = jnp.clip(r * bright, 0.0, 1.0)
                g = jnp.clip(g * bright, 0.0, 1.0)
                b = jnp.clip(b * bright, 0.0, 1.0)
                # contrast: blend with global mean gray (scalar mc precomputed)
                r = jnp.clip(r * contrast + mc, 0.0, 1.0)
                g = jnp.clip(g * contrast + mc, 0.0, 1.0)
                b = jnp.clip(b * contrast + mc, 0.0, 1.0)
                # saturation: blend with per-pixel grayscale
                lum = _RGB_W[0] * r + _RGB_W[1] * g + _RGB_W[2] * b
                l_oms = lum * oms
                r = jnp.clip(r * sat + l_oms, 0.0, 1.0)
                g = jnp.clip(g * sat + l_oms, 0.0, 1.0)
                b = jnp.clip(b * sat + l_oms, 0.0, 1.0)
                # hue: HSV round trip with closed-form inverse
                h, sv, v = _rgb_to_hsv(r, g, b)
                h = (h + hue) % 1.0
                r, g, b = _hsv_to_rgb(h, sv, v)
                # grayscale blend (gray_f in {0,1} -> exact) + Normalize FMA,
                # fused into the single store.
                gray = _RGB_W[0] * r + _RGB_W[1] * g + _RGB_W[2] * b
                gg = gray * gray_f
                o_ref[0, pl.ds(row, _STRIP), :] = (one_m_gray * r + gg) * a_r + b_r
                o_ref[0, pl.ds(H + row, _STRIP), :] = (one_m_gray * g + gg) * a_g + b_g
                o_ref[0, pl.ds(2 * H + row, _STRIP), :] = (one_m_gray * b + gg) * a_b + b_b
                return carry

            lax.fori_loop(0, nstrips, strip_body, 0)

        @pl.when(jit_f <= 0.5)
        def _():
            r = x_ref[0, pl.ds(0, H), :]
            g = x_ref[0, pl.ds(H, H), :]
            b = x_ref[0, pl.ds(2 * H, H), :]
            gray = _RGB_W[0] * r + _RGB_W[1] * g + _RGB_W[2] * b
            gg = gray * gray_f
            o_ref[0, pl.ds(0, H), :] = (one_m_gray * r + gg) * a_r + b_r
            o_ref[0, pl.ds(H, H), :] = (one_m_gray * g + gg) * a_g + b_g
            o_ref[0, pl.ds(2 * H, H), :] = (one_m_gray * b + gg) * a_b + b_b

        # --- spatial phase ------------------------------------------------------
        # Blur fired: bf16 operators (flip folded into mw when it also fired),
        # merged (3H, W) @ (W, W) dot for the W side, per-channel (H,H)@(H,W)
        # dots for the H side.  Normalize already applied (commutes with blur).
        @pl.when(blur_f > 0.5)
        def _():
            slab = o_ref[0].astype(jnp.bfloat16)                      # (3H, W)
            yw = jnp.dot(slab, mw_ref[0], preferred_element_type=jnp.float32)
            mh = mh_ref[0]                                            # (H, H) bf16
            for c in range(3):
                blk = yw[c * H:(c + 1) * H, :].astype(jnp.bfloat16)   # (H, W)
                o_ref[0, pl.ds(c * H, H), :] = jnp.dot(
                    mh, blk, preferred_element_type=jnp.float32)

        # Flip only: exact permutation matmul against an iota-built reversal
        # matrix (no operator DMA, no H-side matmul, bit-exact at HIGHEST).
        @pl.when((flip_f > 0.5) & (blur_f <= 0.5))
        def _():
            rows = lax.broadcasted_iota(jnp.int32, (W, W), 0)
            cols = lax.broadcasted_iota(jnp.int32, (W, W), 1)
            rev = (rows + cols == W - 1).astype(jnp.float32)
            o_ref[0] = jnp.dot(o_ref[0], rev, precision=lax.Precision.HIGHEST,
                               preferred_element_type=jnp.float32)

    return kernel


# ----------------------------- wrapper / glue --------------------------------

def _gaussian_1d(sigma, ksize):
    """softmax(-x^2 / (2 sigma^2)) over an odd window `ksize`, per image."""
    x = jnp.arange(ksize, dtype=jnp.float32) - (ksize // 2)
    logits = -(x[None, :] ** 2) / (2.0 * sigma[:, None] ** 2)
    return jax.nn.softmax(logits, axis=-1)                    # (B, K)


def _blur_operator(size, weights):
    """Left operator L (B, size, size): (L @ v)[i] = sum_t w[t] v[reflect(i+t-R)],
    with PyTorch-style 'reflect' padding (no edge repeat)."""
    k = weights.shape[-1]
    r = k // 2
    i = jnp.arange(size)
    t = jnp.arange(k) - r
    idx = i[:, None] + t[None, :]                             # (size, K)
    idx = jnp.where(idx < 0, -idx, idx)
    idx = jnp.where(idx >= size, 2 * size - 2 - idx, idx)
    onehot = jax.nn.one_hot(idx, size, dtype=jnp.float32)     # (size, K, size)
    return jnp.einsum('bt,itk->bik', weights, onehot)         # (B, size, size)


def sample_params(key, batch, height, width, img_size=None, jitter_strength=1.0,
                  gaussian_blur=True, normalize=None):
    """Sample per-image augmentation scalars + bf16 blur operators + op index."""
    if img_size is None:
        img_size = height
    bs = 0.8 * jitter_strength
    hs = 0.2 * jitter_strength
    ks = jax.random.split(key, 9)
    flip = (jax.random.uniform(ks[0], (batch,)) < 0.5).astype(jnp.float32)
    jit = (jax.random.uniform(ks[1], (batch,)) < 0.8).astype(jnp.float32)
    lo = max(0.0, 1.0 - bs)
    bright = jax.random.uniform(ks[2], (batch,), minval=lo, maxval=1.0 + bs)
    contrast = jax.random.uniform(ks[3], (batch,), minval=lo, maxval=1.0 + bs)
    sat = jax.random.uniform(ks[4], (batch,), minval=lo, maxval=1.0 + bs)
    hue = jax.random.uniform(ks[5], (batch,), minval=-hs, maxval=hs)
    gray = (jax.random.uniform(ks[6], (batch,)) < 0.2).astype(jnp.float32)

    if gaussian_blur:
        ksize = int(0.1 * img_size)
        if ksize % 2 == 0:
            ksize += 1
        ksize = max(ksize, 1)
        blur = (jax.random.uniform(ks[7], (batch,)) < 0.5).astype(jnp.float32)
        sigma = jax.random.uniform(ks[8], (batch,), minval=0.1, maxval=2.0)
    else:
        ksize = 1
        blur = jnp.zeros((batch,), jnp.float32)
        sigma = jnp.ones((batch,), jnp.float32)

    if normalize is None:
        a = jnp.ones((batch, 3), jnp.float32)
        bsh = jnp.zeros((batch, 3), jnp.float32)
    else:
        mean, std = normalize
        mean = jnp.asarray(mean, jnp.float32)
        std = jnp.asarray(std, jnp.float32)
        a = jnp.broadcast_to(1.0 / std, (batch, 3))
        bsh = jnp.broadcast_to(-mean / std, (batch, 3))

    pad = jnp.zeros((batch,), jnp.float32)
    cols = [jit, bright, contrast, sat, hue, gray, flip, blur,
            a[:, 0], a[:, 1], a[:, 2], bsh[:, 0], bsh[:, 1], bsh[:, 2], pad, pad]
    params = jnp.stack(cols, axis=1).astype(jnp.float32).reshape(-1)   # (B*16,)

    # bf16 blur operators; only read by images whose blur flag fired.  The W
    # operator has the horizontal flip folded in (row reversal) when flip also
    # fired for that image.
    gauss = _gaussian_1d(sigma, ksize)                        # (B, K)
    bw = jnp.swapaxes(_blur_operator(width, gauss), 1, 2)     # right op along W
    mw = jnp.where(flip[:, None, None] > 0.5, bw[:, ::-1, :], bw)
    mh = _blur_operator(height, gauss)                        # left op along H
    mw = mw.astype(jnp.bfloat16)
    mh = mh.astype(jnp.bfloat16)

    # Operator block index = "index of most recent blurred image": non-blur
    # steps repeat the previous block index so Pallas skips their operator DMA.
    idx = jnp.arange(batch, dtype=jnp.int32)
    op_blk = jnp.maximum(
        lax.cummax(jnp.where(blur > 0.5, idx, jnp.int32(-1)), axis=0), 0
    ).astype(jnp.int32)
    return params, op_blk, mw, mh


@jax.jit
def simclr_pretrain_post_transform(x, params, op_blk, mw, mh):
    """x: (B,3,H,W) f32 in [0,1]; params: (B*16,) f32; op_blk: (B,) i32;
    mw: (B,W,W) bf16; mh: (B,H,H) bf16."""
    B, C, H, W = x.shape
    assert C == 3, "SimCLR post-transform expects RGB (C=3) images"
    assert H % _STRIP == 0, "H must be a multiple of 8 (sublane strip)"
    x2 = x.astype(jnp.float32).reshape(B, C * H, W)           # lane-dense slab
    kernel = _make_kernel(H, W)
    out = pl.pallas_call(
        kernel,
        out_shape=jax.ShapeDtypeStruct((B, C * H, W), jnp.float32),
        grid_spec=pltpu.PrefetchScalarGridSpec(
            num_scalar_prefetch=1,
            grid=(B,),
            in_specs=[
                pl.BlockSpec(memory_space=pltpu.MemorySpace.SMEM),       # params
                pl.BlockSpec((1, C * H, W), lambda b, op: (b, 0, 0)),    # image slab
                pl.BlockSpec((1, W, W), lambda b, op: (op[b], 0, 0)),    # W operator
                pl.BlockSpec((1, H, H), lambda b, op: (op[b], 0, 0)),    # H operator
            ],
            out_specs=pl.BlockSpec((1, C * H, W), lambda b, op: (b, 0, 0)),
        ),
        compiler_params=pltpu.CompilerParams(
            dimension_semantics=("parallel",)),
    )(op_blk, params, x2, mw, mh)
    return out.reshape(B, C, H, W)


if __name__ == "__main__":
    key = jax.random.PRNGKey(0)
    kx, kp = jax.random.split(key)
    B, C, H, W = 4, 3, 32, 32
    x = jax.random.uniform(kx, (B, C, H, W), dtype=jnp.float32)  # images in [0,1]
    params, op_blk, mw, mh = sample_params(kp, B, H, W, jitter_strength=1.0,
                                           gaussian_blur=True, normalize=None)
    y = simclr_pretrain_post_transform(x, params, op_blk, mw, mh)
    jax.block_until_ready(y)
    assert y.shape == (B, C, H, W) and y.dtype == jnp.float32
    assert bool(jnp.all(jnp.isfinite(y)))
    print("KERNEL_OK")
</pallas_src>

<mosaic_0001>
module attributes {stable_mosaic.version = 11 : i64} {
  func.func @kernel(%arg0: i32, %arg1: memref<4xi32, #tpu.memory_space<smem>>, %arg2: memref<64xf32, #tpu.memory_space<smem>>, %arg3: memref<1x96x32xf32, #tpu.memory_space<vmem>>, %arg4: memref<1x32x32xbf16, #tpu.memory_space<vmem>>, %arg5: memref<1x32x32xbf16, #tpu.memory_space<vmem>>, %arg6: memref<1x96x32xf32, #tpu.memory_space<vmem>>) attributes {dimension_semantics = [#tpu.dimension_semantics<parallel>], iteration_bounds = array<i64: 4>, scalar_prefetch = 1 : i64, scratch_operands = 0 : i64, tpu.core_type = #tpu.core_type<tc>, window_params = [{transform_indices = @transform_0, window_bounds = array<i64: 64>}, {transform_indices = @transform_1, window_bounds = array<i64: 1, 96, 32>}, {transform_indices = @transform_2, window_bounds = array<i64: 1, 32, 32>}, {transform_indices = @transform_3, window_bounds = array<i64: 1, 32, 32>}, {transform_indices = @transform_4, window_bounds = array<i64: 1, 96, 32>}]} {
    %c16_i32 = arith.constant 16 : i32
    %0 = arith.muli %arg0, %c16_i32 : i32
    %c0_i32 = arith.constant 0 : i32
    %1 = arith.addi %0, %c0_i32 : i32
    %2 = arith.index_cast %1 : i32 to index
    %3 = memref.load %arg2[%2] : memref<64xf32, #tpu.memory_space<smem>>
    %c1_i32 = arith.constant 1 : i32
    %4 = arith.addi %0, %c1_i32 : i32
    %5 = arith.index_cast %4 : i32 to index
    %6 = memref.load %arg2[%5] : memref<64xf32, #tpu.memory_space<smem>>
    %c2_i32 = arith.constant 2 : i32
    %7 = arith.addi %0, %c2_i32 : i32
    %8 = arith.index_cast %7 : i32 to index
    %9 = memref.load %arg2[%8] : memref<64xf32, #tpu.memory_space<smem>>
    %c3_i32 = arith.constant 3 : i32
    %10 = arith.addi %0, %c3_i32 : i32
    %11 = arith.index_cast %10 : i32 to index
    %12 = memref.load %arg2[%11] : memref<64xf32, #tpu.memory_space<smem>>
    %c4_i32 = arith.constant 4 : i32
    %13 = arith.addi %0, %c4_i32 : i32
    %14 = arith.index_cast %13 : i32 to index
    %15 = memref.load %arg2[%14] : memref<64xf32, #tpu.memory_space<smem>>
    %c5_i32 = arith.constant 5 : i32
    %16 = arith.addi %0, %c5_i32 : i32
    %17 = arith.index_cast %16 : i32 to index
    %18 = memref.load %arg2[%17] : memref<64xf32, #tpu.memory_space<smem>>
    %c6_i32 = arith.constant 6 : i32
    %19 = arith.addi %0, %c6_i32 : i32
    %20 = arith.index_cast %19 : i32 to index
    %21 = memref.load %arg2[%20] : memref<64xf32, #tpu.memory_space<smem>>
    %c7_i32 = arith.constant 7 : i32
    %22 = arith.addi %0, %c7_i32 : i32
    %23 = arith.index_cast %22 : i32 to index
    %24 = memref.load %arg2[%23] : memref<64xf32, #tpu.memory_space<smem>>
    %c8_i32 = arith.constant 8 : i32
    %25 = arith.addi %0, %c8_i32 : i32
    %26 = arith.index_cast %25 : i32 to index
    %27 = memref.load %arg2[%26] : memref<64xf32, #tpu.memory_space<smem>>
    %c9_i32 = arith.constant 9 : i32
    %28 = arith.addi %0, %c9_i32 : i32
    %29 = arith.index_cast %28 : i32 to index
    %30 = memref.load %arg2[%29] : memref<64xf32, #tpu.memory_space<smem>>
    %c10_i32 = arith.constant 10 : i32
    %31 = arith.addi %0, %c10_i32 : i32
    %32 = arith.index_cast %31 : i32 to index
    %33 = memref.load %arg2[%32] : memref<64xf32, #tpu.memory_space<smem>>
    %c11_i32 = arith.constant 11 : i32
    %34 = arith.addi %0, %c11_i32 : i32
    %35 = arith.index_cast %34 : i32 to index
    %36 = memref.load %arg2[%35] : memref<64xf32, #tpu.memory_space<smem>>
    %c12_i32 = arith.constant 12 : i32
    %37 = arith.addi %0, %c12_i32 : i32
    %38 = arith.index_cast %37 : i32 to index
    %39 = memref.load %arg2[%38] : memref<64xf32, #tpu.memory_space<smem>>
    %c13_i32 = arith.constant 13 : i32
    %40 = arith.addi %0, %c13_i32 : i32
    %41 = arith.index_cast %40 : i32 to index
    %42 = memref.load %arg2[%41] : memref<64xf32, #tpu.memory_space<smem>>
    %cst = arith.constant 1.000000e+00 : f32
    %43 = arith.subf %cst, %18 : f32
    %cst_0 = arith.constant 5.000000e-01 : f32
    %44 = arith.cmpf ogt, %3, %cst_0 : f32
    %45 = arith.extui %44 : i1 to i32
    %c0_i32_1 = arith.constant 0 : i32
    %46 = arith.cmpi ne, %45, %c0_i32_1 : i32
    scf.if %46 {
      %cst_9 = arith.constant 0.000000e+00 : f32
      %c0_i32_10 = arith.constant 0 : i32
      %c4_i32_11 = arith.constant 4 : i32
      %58 = arith.addi %c0_i32_10, %c4_i32_11 : i32
      %c1_i32_12 = arith.constant 1 : i32
      %59 = scf.for %arg7 = %c0_i32_10 to %58 step %c1_i32_12 iter_args(%arg8 = %cst_9) -> (f32)  : i32 {
        %c8_i32_21 = arith.constant 8 : i32
        %65 = arith.muli %arg7, %c8_i32_21 : i32
        %66 = tpu.assume_multiple %65, 8 : i32
        %c0 = arith.constant 0 : index
        %67 = arith.index_cast %66 : i32 to index
        %c0_22 = arith.constant 0 : index
        %68 = vector.load %arg3[%c0, %67, %c0_22] : memref<1x96x32xf32, #tpu.memory_space<vmem>>, vector<1x8x32xf32>
        %69 = vector.shape_cast %68 : vector<1x8x32xf32> to vector<8x32xf32>
        %70 = vector.broadcast %6 : f32 to vector<8x32xf32>
        %71 = arith.mulf %69, %70 : vector<8x32xf32>
        %cst_23 = arith.constant 0.000000e+00 : f32
        %cst_24 = arith.constant 1.000000e+00 : f32
        %72 = vector.broadcast %cst_23 : f32 to vector<8x32xf32>
        %73 = arith.maximumf %72, %71 : vector<8x32xf32>
        %74 = vector.broadcast %cst_24 : f32 to vector<8x32xf32>
        %75 = arith.minimumf %74, %73 : vector<8x32xf32>
        %c32_i32 = arith.constant 32 : i32
        %76 = arith.addi %c32_i32, %66 : i32
        %c0_25 = arith.constant 0 : index
        %77 = arith.index_cast %76 : i32 to index
        %c0_26 = arith.constant 0 : index
        %78 = vector.load %arg3[%c0_25, %77, %c0_26] : memref<1x96x32xf32, #tpu.memory_space<vmem>>, vector<1x8x32xf32>
        %79 = vector.shape_cast %78 : vector<1x8x32xf32> to vector<8x32xf32>
        %80 = vector.broadcast %6 : f32 to vector<8x32xf32>
        %81 = arith.mulf %79, %80 : vector<8x32xf32>
        %cst_27 = arith.constant 0.000000e+00 : f32
        %cst_28 = arith.constant 1.000000e+00 : f32
        %82 = vector.broadcast %cst_27 : f32 to vector<8x32xf32>
        %83 = arith.maximumf %82, %81 : vector<8x32xf32>
        %84 = vector.broadcast %cst_28 : f32 to vector<8x32xf32>
        %85 = arith.minimumf %84, %83 : vector<8x32xf32>
        %c64_i32 = arith.constant 64 : i32
        %86 = arith.addi %c64_i32, %66 : i32
        %c0_29 = arith.constant 0 : index
        %87 = arith.index_cast %86 : i32 to index
        %c0_30 = arith.constant 0 : index
        %88 = vector.load %arg3[%c0_29, %87, %c0_30] : memref<1x96x32xf32, #tpu.memory_space<vmem>>, vector<1x8x32xf32>
        %89 = vector.shape_cast %88 : vector<1x8x32xf32> to vector<8x32xf32>
        %90 = vector.broadcast %6 : f32 to vector<8x32xf32>
        %91 = arith.mulf %89, %90 : vector<8x32xf32>
        %cst_31 = arith.constant 0.000000e+00 : f32
        %cst_32 = arith.constant 1.000000e+00 : f32
        %92 = vector.broadcast %cst_31 : f32 to vector<8x32xf32>
        %93 = arith.maximumf %92, %91 : vector<8x32xf32>
        %94 = vector.broadcast %cst_32 : f32 to vector<8x32xf32>
        %95 = arith.minimumf %94, %93 : vector<8x32xf32>
        %cst_33 = arith.constant 2.990000e-01 : f32
        %96 = vector.broadcast %cst_33 : f32 to vector<8x32xf32>
        %97 = arith.mulf %96, %75 : vector<8x32xf32>
        %cst_34 = arith.constant 5.870000e-01 : f32
        %98 = vector.broadcast %cst_34 : f32 to vector<8x32xf32>
        %99 = arith.mulf %98, %85 : vector<8x32xf32>
        %100 = arith.addf %97, %99 : vector<8x32xf32>
        %cst_35 = arith.constant 1.140000e-01 : f32
        %101 = vector.broadcast %cst_35 : f32 to vector<8x32xf32>
        %102 = arith.mulf %101, %95 : vector<8x32xf32>
        %103 = arith.addf %100, %102 : vector<8x32xf32>
        %104 = vector.shape_cast %103 : vector<8x32xf32> to vector<1x8x32xf32>
        %cst_36 = arith.constant dense<0.000000e+00> : vector<1xf32>
        %105 = vector.multi_reduction <add>, %104, %cst_36 [1, 2] : vector<1x8x32xf32> to vector<1xf32>
        %106 = vector.shape_cast %105 : vector<1xf32> to vector<1x1x1xf32>
        %107 = vector.extract %106[0, 0, 0] : f32 from vector<1x1x1xf32>
        %108 = arith.addf %arg8, %107 : f32
        scf.yield %108 : f32
      }
      %c4_i32_13 = arith.constant 4 : i32
      %cst_14 = arith.constant 9.765625E-4 : f32
      %60 = arith.mulf %59, %cst_14 : f32
      %cst_15 = arith.constant 1.000000e+00 : f32
      %61 = arith.subf %cst_15, %9 : f32
      %62 = arith.mulf %60, %61 : f32
      %cst_16 = arith.constant 1.000000e+00 : f32
      %63 = arith.subf %cst_16, %12 : f32
      %c0_i32_17 = arith.constant 0 : i32
      %c4_i32_18 = arith.constant 4 : i32
      %64 = arith.addi %c0_i32_17, %c4_i32_18 : i32
      %c1_i32_19 = arith.constant 1 : i32
      scf.for %arg7 = %c0_i32_17 to %64 step %c1_i32_19  : i32 {
        %c8_i32_21 = arith.constant 8 : i32
        %65 = arith.muli %arg7, %c8_i32_21 : i32
        %66 = tpu.assume_multiple %65, 8 : i32
        %c0 = arith.constant 0 : index
        %67 = arith.index_cast %66 : i32 to index
        %c0_22 = arith.constant 0 : index
        %68 = vector.load %arg3[%c0, %67, %c0_22] : memref<1x96x32xf32, #tpu.memory_space<vmem>>, vector<1x8x32xf32>
        %69 = vector.shape_cast %68 : vector<1x8x32xf32> to vector<8x32xf32>
        %c32_i32 = arith.constant 32 : i32
        %70 = arith.addi %c32_i32, %66 : i32
        %c0_23 = arith.constant 0 : index
        %71 = arith.index_cast %70 : i32 to index
        %c0_24 = arith.constant 0 : index
        %72 = vector.load %arg3[%c0_23, %71, %c0_24] : memref<1x96x32xf32, #tpu.memory_space<vmem>>, vector<1x8x32xf32>
        %73 = vector.shape_cast %72 : vector<1x8x32xf32> to vector<8x32xf32>
        %c64_i32 = arith.constant 64 : i32
        %74 = arith.addi %c64_i32, %66 : i32
        %c0_25 = arith.constant 0 : index
        %75 = arith.index_cast %74 : i32 to index
        %c0_26 = arith.constant 0 : index
        %76 = vector.load %arg3[%c0_25, %75, %c0_26] : memref<1x96x32xf32, #tpu.memory_space<vmem>>, vector<1x8x32xf32>
        %77 = vector.shape_cast %76 : vector<1x8x32xf32> to vector<8x32xf32>
        %78 = vector.broadcast %6 : f32 to vector<8x32xf32>
        %79 = arith.mulf %69, %78 : vector<8x32xf32>
        %cst_27 = arith.constant 0.000000e+00 : f32
        %cst_28 = arith.constant 1.000000e+00 : f32
        %80 = vector.broadcast %cst_27 : f32 to vector<8x32xf32>
        %81 = arith.maximumf %80, %79 : vector<8x32xf32>
        %82 = vector.broadcast %cst_28 : f32 to vector<8x32xf32>
        %83 = arith.minimumf %82, %81 : vector<8x32xf32>
        %84 = vector.broadcast %6 : f32 to vector<8x32xf32>
        %85 = arith.mulf %73, %84 : vector<8x32xf32>
        %cst_29 = arith.constant 0.000000e+00 : f32
        %cst_30 = arith.constant 1.000000e+00 : f32
        %86 = vector.broadcast %cst_29 : f32 to vector<8x32xf32>
        %87 = arith.maximumf %86, %85 : vector<8x32xf32>
        %88 = vector.broadcast %cst_30 : f32 to vector<8x32xf32>
        %89 = arith.minimumf %88, %87 : vector<8x32xf32>
        %90 = vector.broadcast %6 : f32 to vector<8x32xf32>
        %91 = arith.mulf %77, %90 : vector<8x32xf32>
        %cst_31 = arith.constant 0.000000e+00 : f32
        %cst_32 = arith.constant 1.000000e+00 : f32
        %92 = vector.broadcast %cst_31 : f32 to vector<8x32xf32>
        %93 = arith.maximumf %92, %91 : vector<8x32xf32>
        %94 = vector.broadcast %cst_32 : f32 to vector<8x32xf32>
        %95 = arith.minimumf %94, %93 : vector<8x32xf32>
        %96 = vector.broadcast %9 : f32 to vector<8x32xf32>
        %97 = arith.mulf %83, %96 : vector<8x32xf32>
        %98 = vector.broadcast %62 : f32 to vector<8x32xf32>
        %99 = arith.addf %97, %98 : vector<8x32xf32>
        %cst_33 = arith.constant 0.000000e+00 : f32
        %cst_34 = arith.constant 1.000000e+00 : f32
        %100 = vector.broadcast %cst_33 : f32 to vector<8x32xf32>
        %101 = arith.maximumf %100, %99 : vector<8x32xf32>
        %102 = vector.broadcast %cst_34 : f32 to vector<8x32xf32>
        %103 = arith.minimumf %102, %101 : vector<8x32xf32>
        %104 = vector.broadcast %9 : f32 to vector<8x32xf32>
        %105 = arith.mulf %89, %104 : vector<8x32xf32>
        %106 = vector.broadcast %62 : f32 to vector<8x32xf32>
        %107 = arith.addf %105, %106 : vector<8x32xf32>
        %cst_35 = arith.constant 0.000000e+00 : f32
        %cst_36 = arith.constant 1.000000e+00 : f32
        %108 = vector.broadcast %cst_35 : f32 to vector<8x32xf32>
        %109 = arith.maximumf %108, %107 : vector<8x32xf32>
        %110 = vector.broadcast %cst_36 : f32 to vector<8x32xf32>
        %111 = arith.minimumf %110, %109 : vector<8x32xf32>
        %112 = vector.broadcast %9 : f32 to vector<8x32xf32>
        %113 = arith.mulf %95, %112 : vector<8x32xf32>
        %114 = vector.broadcast %62 : f32 to vector<8x32xf32>
        %115 = arith.addf %113, %114 : vector<8x32xf32>
        %cst_37 = arith.constant 0.000000e+00 : f32
        %cst_38 = arith.constant 1.000000e+00 : f32
        %116 = vector.broadcast %cst_37 : f32 to vector<8x32xf32>
        %117 = arith.maximumf %116, %115 : vector<8x32xf32>
        %118 = vector.broadcast %cst_38 : f32 to vector<8x32xf32>
        %119 = arith.minimumf %118, %117 : vector<8x32xf32>
        %cst_39 = arith.constant 2.990000e-01 : f32
        %120 = vector.broadcast %cst_39 : f32 to vector<8x32xf32>
        %121 = arith.mulf %120, %103 : vector<8x32xf32>
        %cst_40 = arith.constant 5.870000e-01 : f32
        %122 = vector.broadcast %cst_40 : f32 to vector<8x32xf32>
        %123 = arith.mulf %122, %111 : vector<8x32xf32>
        %124 = arith.addf %121, %123 : vector<8x32xf32>
        %cst_41 = arith.constant 1.140000e-01 : f32
        %125 = vector.broadcast %cst_41 : f32 to vector<8x32xf32>
        %126 = arith.mulf %125, %119 : vector<8x32xf32>
        %127 = arith.addf %124, %126 : vector<8x32xf32>
        %128 = vector.broadcast %63 : f32 to vector<8x32xf32>
        %129 = arith.mulf %127, %128 : vector<8x32xf32>
        %130 = vector.broadcast %12 : f32 to vector<8x32xf32>
        %131 = arith.mulf %103, %130 : vector<8x32xf32>
        %132 = arith.addf %131, %129 : vector<8x32xf32>
        %cst_42 = arith.constant 0.000000e+00 : f32
        %cst_43 = arith.constant 1.000000e+00 : f32
        %133 = vector.broadcast %cst_42 : f32 to vector<8x32xf32>
        %134 = arith.maximumf %133, %132 : vector<8x32xf32>
        %135 = vector.broadcast %cst_43 : f32 to vector<8x32xf32>
        %136 = arith.minimumf %135, %134 : vector<8x32xf32>
        %137 = vector.broadcast %12 : f32 to vector<8x32xf32>
        %138 = arith.mulf %111, %137 : vector<8x32xf32>
        %139 = arith.addf %138, %129 : vector<8x32xf32>
        %cst_44 = arith.constant 0.000000e+00 : f32
        %cst_45 = arith.constant 1.000000e+00 : f32
        %140 = vector.broadcast %cst_44 : f32 to vector<8x32xf32>
        %141 = arith.maximumf %140, %139 : vector<8x32xf32>
        %142 = vector.broadcast %cst_45 : f32 to vector<8x32xf32>
        %143 = arith.minimumf %142, %141 : vector<8x32xf32>
        %144 = vector.broadcast %12 : f32 to vector<8x32xf32>
        %145 = arith.mulf %119, %144 : vector<8x32xf32>
        %146 = arith.addf %145, %129 : vector<8x32xf32>
        %cst_46 = arith.constant 0.000000e+00 : f32
        %cst_47 = arith.constant 1.000000e+00 : f32
        %147 = vector.broadcast %cst_46 : f32 to vector<8x32xf32>
        %148 = arith.maximumf %147, %146 : vector<8x32xf32>
        %149 = vector.broadcast %cst_47 : f32 to vector<8x32xf32>
        %150 = arith.minimumf %149, %148 : vector<8x32xf32>
        %151 = arith.maximumf %136, %143 : vector<8x32xf32>
        %152 = arith.maximumf %151, %150 : vector<8x32xf32>
        %153 = arith.minimumf %136, %143 : vector<8x32xf32>
        %154 = arith.minimumf %153, %150 : vector<8x32xf32>
        %155 = arith.subf %152, %154 : vector<8x32xf32>
        %cst_48 = arith.constant 9.99999993E-9 : f32
        %156 = vector.broadcast %cst_48 : f32 to vector<8x32xf32>
        %157 = arith.maximumf %152, %156 : vector<8x32xf32>
        %158 = tpu.reciprocal %157 {approx = true} : vector<8x32xf32> -> vector<8x32xf32>
        %159 = arith.mulf %155, %158 : vector<8x32xf32>
        %cst_49 = arith.constant 9.99999993E-9 : f32
        %160 = vector.broadcast %cst_49 : f32 to vector<8x32xf32>
        %161 = arith.cmpf ogt, %155, %160 : vector<8x32xf32>
        %cst_50 = arith.constant 1.000000e+00 : f32
        %162 = vector.broadcast %cst_50 : f32 to vector<8x32xf32>
        %163 = arith.select %161, %155, %162 : vector<8x32xi1>, vector<8x32xf32>
        %164 = tpu.reciprocal %163 {approx = true} : vector<8x32xf32> -> vector<8x32xf32>
        %165 = arith.subf %152, %136 : vector<8x32xf32>
        %166 = arith.mulf %165, %164 : vector<8x32xf32>
        %167 = arith.subf %152, %143 : vector<8x32xf32>
        %168 = arith.mulf %167, %164 : vector<8x32xf32>
        %169 = arith.subf %152, %150 : vector<8x32xf32>
        %170 = arith.mulf %169, %164 : vector<8x32xf32>
        %171 = arith.cmpf oeq, %152, %136 : vector<8x32xf32>
        %172 = arith.subf %170, %168 : vector<8x32xf32>
        %173 = arith.cmpf oeq, %152, %143 : vector<8x32xf32>
        %cst_51 = arith.constant 2.000000e+00 : f32
        %174 = vector.broadcast %cst_51 : f32 to vector<8x32xf32>
        %175 = arith.addf %174, %166 : vector<8x32xf32>
        %176 = arith.subf %175, %170 : vector<8x32xf32>
        %cst_52 = arith.constant 4.000000e+00 : f32
        %177 = vector.broadcast %cst_52 : f32 to vector<8x32xf32>
        %178 = arith.addf %177, %168 : vector<8x32xf32>
        %179 = arith.subf %178, %166 : vector<8x32xf32>
        %180 = arith.select %173, %176, %179 : vector<8x32xi1>, vector<8x32xf32>
        %181 = arith.select %171, %172, %180 : vector<8x32xi1>, vector<8x32xf32>
        %cst_53 = arith.constant 9.99999993E-9 : f32
        %182 = vector.broadcast %cst_53 : f32 to vector<8x32xf32>
        %183 = arith.cmpf ogt, %155, %182 : vector<8x32xf32>
        %cst_54 = arith.constant 0.166666672 : f32
        %184 = vector.broadcast %cst_54 : f32 to vector<8x32xf32>
        %185 = arith.mulf %181, %184 : vector<8x32xf32>
        %cst_55 = arith.constant 0.000000e+00 : f32
        %186 = vector.broadcast %cst_55 : f32 to vector<8x32xf32>
        %187 = arith.select %183, %185, %186 : vector<8x32xi1>, vector<8x32xf32>
        %188 = vector.broadcast %15 : f32 to vector<8x32xf32>
        %189 = arith.addf %187, %188 : vector<8x32xf32>
        %cst_56 = arith.constant 1.000000e+00 : f32
        %190 = vector.broadcast %cst_56 : f32 to vector<8x32xf32>
        %191 = arith.remf %189, %190 : vector<8x32xf32>
        %cst_57 = arith.constant 0.000000e+00 : f32
        %192 = vector.broadcast %cst_57 : f32 to vector<8x32xf32>
        %193 = arith.cmpf one, %191, %192 : vector<8x32xf32>
        %cst_58 = arith.constant 0.000000e+00 : f32
        %194 = vector.broadcast %cst_58 : f32 to vector<8x32xf32>
        %195 = arith.cmpf olt, %191, %194 : vector<8x32xf32>
        %cst_59 = arith.constant 0.000000e+00 : f32
        %196 = arith.cmpf olt, %cst_56, %cst_59 : f32
        %197 = vector.broadcast %196 : i1 to vector<8x32xi1>
        %198 = vector.broadcast %197 : vector<8x32xi1> to vector<8x32xi1>
        %199 = arith.xori %195, %198 : vector<8x32xi1>
        %200 = arith.andi %199, %193 : vector<8x32xi1>
        %201 = vector.broadcast %cst_56 : f32 to vector<8x32xf32>
        %202 = arith.addf %191, %201 : vector<8x32xf32>
        %203 = arith.select %200, %202, %191 : vector<8x32xi1>, vector<8x32xf32>
        %cst_60 = arith.constant 6.000000e+00 : f32
        %204 = vector.broadcast %cst_60 : f32 to vector<8x32xf32>
        %205 = arith.mulf %203, %204 : vector<8x32xf32>
        %cst_61 = arith.constant 3.000000e+00 : f32
        %206 = vector.broadcast %cst_61 : f32 to vector<8x32xf32>
        %207 = arith.subf %205, %206 : vector<8x32xf32>
        %208 = math.absf %207 : vector<8x32xf32>
        %cst_62 = arith.constant 1.000000e+00 : f32
        %209 = vector.broadcast %cst_62 : f32 to vector<8x32xf32>
        %210 = arith.subf %208, %209 : vector<8x32xf32>
        %cst_63 = arith.constant 0.000000e+00 : f32
        %cst_64 = arith.constant 1.000000e+00 : f32
        %211 = vector.broadcast %cst_63 : f32 to vector<8x32xf32>
        %212 = arith.maximumf %211, %210 : vector<8x32xf32>
        %213 = vector.broadcast %cst_64 : f32 to vector<8x32xf32>
        %214 = arith.minimumf %213, %212 : vector<8x32xf32>
        %cst_65 = arith.constant 2.000000e+00 : f32
        %215 = vector.broadcast %cst_65 : f32 to vector<8x32xf32>
        %216 = arith.subf %205, %215 : vector<8x32xf32>
        %217 = math.absf %216 : vector<8x32xf32>
        %cst_66 = arith.constant 2.000000e+00 : f32
        %218 = vector.broadcast %cst_66 : f32 to vector<8x32xf32>
        %219 = arith.subf %218, %217 : vector<8x32xf32>
        %cst_67 = arith.constant 0.000000e+00 : f32
        %cst_68 = arith.constant 1.000000e+00 : f32
        %220 = vector.broadcast %cst_67 : f32 to vector<8x32xf32>
        %221 = arith.maximumf %220, %219 : vector<8x32xf32>
        %222 = vector.broadcast %cst_68 : f32 to vector<8x32xf32>
        %223 = arith.minimumf %222, %221 : vector<8x32xf32>
        %cst_69 = arith.constant 4.000000e+00 : f32
        %224 = vector.broadcast %cst_69 : f32 to vector<8x32xf32>
        %225 = arith.subf %205, %224 : vector<8x32xf32>
        %226 = math.absf %225 : vector<8x32xf32>
        %cst_70 = arith.constant 2.000000e+00 : f32
        %227 = vector.broadcast %cst_70 : f32 to vector<8x32xf32>
        %228 = arith.subf %227, %226 : vector<8x32xf32>
        %cst_71 = arith.constant 0.000000e+00 : f32
        %cst_72 = arith.constant 1.000000e+00 : f32
        %229 = vector.broadcast %cst_71 : f32 to vector<8x32xf32>
        %230 = arith.maximumf %229, %228 : vector<8x32xf32>
        %231 = vector.broadcast %cst_72 : f32 to vector<8x32xf32>
        %232 = arith.minimumf %231, %230 : vector<8x32xf32>
        %cst_73 = arith.constant 1.000000e+00 : f32
        %233 = vector.broadcast %cst_73 : f32 to vector<8x32xf32>
        %234 = arith.subf %214, %233 : vector<8x32xf32>
        %235 = arith.mulf %234, %159 : vector<8x32xf32>
        %cst_74 = arith.constant 1.000000e+00 : f32
        %236 = vector.broadcast %cst_74 : f32 to vector<8x32xf32>
        %237 = arith.addf %235, %236 : vector<8x32xf32>
        %238 = arith.mulf %237, %152 : vector<8x32xf32>
        %cst_75 = arith.constant 1.000000e+00 : f32
        %239 = vector.broadcast %cst_75 : f32 to vector<8x32xf32>
        %240 = arith.subf %223, %239 : vector<8x32xf32>
        %241 = arith.mulf %240, %159 : vector<8x32xf32>
        %cst_76 = arith.constant 1.000000e+00 : f32
        %242 = vector.broadcast %cst_76 : f32 to vector<8x32xf32>
        %243 = arith.addf %241, %242 : vector<8x32xf32>
        %244 = arith.mulf %243, %152 : vector<8x32xf32>
        %cst_77 = arith.constant 1.000000e+00 : f32
        %245 = vector.broadcast %cst_77 : f32 to vector<8x32xf32>
        %246 = arith.subf %232, %245 : vector<8x32xf32>
        %247 = arith.mulf %246, %159 : vector<8x32xf32>
        %cst_78 = arith.constant 1.000000e+00 : f32
        %248 = vector.broadcast %cst_78 : f32 to vector<8x32xf32>
        %249 = arith.addf %247, %248 : vector<8x32xf32>
        %250 = arith.mulf %249, %152 : vector<8x32xf32>
        %cst_79 = arith.constant 2.990000e-01 : f32
        %251 = vector.broadcast %cst_79 : f32 to vector<8x32xf32>
        %252 = arith.mulf %251, %238 : vector<8x32xf32>
        %cst_80 = arith.constant 5.870000e-01 : f32
        %253 = vector.broadcast %cst_80 : f32 to vector<8x32xf32>
        %254 = arith.mulf %253, %244 : vector<8x32xf32>
        %255 = arith.addf %252, %254 : vector<8x32xf32>
        %cst_81 = arith.constant 1.140000e-01 : f32
        %256 = vector.broadcast %cst_81 : f32 to vector<8x32xf32>
        %257 = arith.mulf %256, %250 : vector<8x32xf32>
        %258 = arith.addf %255, %257 : vector<8x32xf32>
        %259 = vector.broadcast %18 : f32 to vector<8x32xf32>
        %260 = arith.mulf %258, %259 : vector<8x32xf32>
        %261 = vector.broadcast %43 : f32 to vector<8x32xf32>
        %262 = arith.mulf %261, %238 : vector<8x32xf32>
        %263 = arith.addf %262, %260 : vector<8x32xf32>
        %264 = vector.broadcast %27 : f32 to vector<8x32xf32>
        %265 = arith.mulf %263, %264 : vector<8x32xf32>
        %266 = vector.broadcast %36 : f32 to vector<8x32xf32>
        %267 = arith.addf %265, %266 : vector<8x32xf32>
        %c0_82 = arith.constant 0 : index
        %268 = arith.index_cast %66 : i32 to index
        %c0_83 = arith.constant 0 : index
        %269 = vector.load %arg6[%c0_82, %268, %c0_83] : memref<1x96x32xf32, #tpu.memory_space<vmem>>, vector<1x8x32xf32>
        %270 = vector.shape_cast %269 : vector<1x8x32xf32> to vector<8x32xf32>
        %271 = vector.shape_cast %267 : vector<8x32xf32> to vector<1x8x32xf32>
        tpu.vector_store %arg6[%c0_82, %268, %c0_83], %271 {strides = array<i32>} : memref<1x96x32xf32, #tpu.memory_space<vmem>>, vector<1x8x32xf32>,
        %272 = vector.broadcast %43 : f32 to vector<8x32xf32>
        %273 = arith.mulf %272, %244 : vector<8x32xf32>
        %274 = arith.addf %273, %260 : vector<8x32xf32>
        %275 = vector.broadcast %30 : f32 to vector<8x32xf32>
        %276 = arith.mulf %274, %275 : vector<8x32xf32>
        %277 = vector.broadcast %39 : f32 to vector<8x32xf32>
        %278 = arith.addf %276, %277 : vector<8x32xf32>
        %c32_i32_84 = arith.constant 32 : i32
        %279 = arith.addi %c32_i32_84, %66 : i32
        %c0_85 = arith.constant 0 : index
        %280 = arith.index_cast %279 : i32 to index
        %c0_86 = arith.constant 0 : index
        %281 = vector.load %arg6[%c0_85, %280, %c0_86] : memref<1x96x32xf32, #tpu.memory_space<vmem>>, vector<1x8x32xf32>
        %282 = vector.shape_cast %281 : vector<1x8x32xf32> to vector<8x32xf32>
        %283 = vector.shape_cast %278 : vector<8x32xf32> to vector<1x8x32xf32>
        tpu.vector_store %arg6[%c0_85, %280, %c0_86], %283 {strides = array<i32>} : memref<1x96x32xf32, #tpu.memory_space<vmem>>, vector<1x8x32xf32>,
        %284 = vector.broadcast %43 : f32 to vector<8x32xf32>
        %285 = arith.mulf %284, %250 : vector<8x32xf32>
        %286 = arith.addf %285, %260 : vector<8x32xf32>
        %287 = vector.broadcast %33 : f32 to vector<8x32xf32>
        %288 = arith.mulf %286, %287 : vector<8x32xf32>
        %289 = vector.broadcast %42 : f32 to vector<8x32xf32>
        %290 = arith.addf %288, %289 : vector<8x32xf32>
        %c64_i32_87 = arith.constant 64 : i32
        %291 = arith.addi %c64_i32_87, %66 : i32
        %c0_88 = arith.constant 0 : index
        %292 = arith.index_cast %291 : i32 to index
        %c0_89 = arith.constant 0 : index
        %293 = vector.load %arg6[%c0_88, %292, %c0_89] : memref<1x96x32xf32, #tpu.memory_space<vmem>>, vector<1x8x32xf32>
        %294 = vector.shape_cast %293 : vector<1x8x32xf32> to vector<8x32xf32>
        %295 = vector.shape_cast %290 : vector<8x32xf32> to vector<1x8x32xf32>
        tpu.vector_store %arg6[%c0_88, %292, %c0_89], %295 {strides = array<i32>} : memref<1x96x32xf32, #tpu.memory_space<vmem>>, vector<1x8x32xf32>,
      }
      %c4_i32_20 = arith.constant 4 : i32
    } else {
    }
    %cst_2 = arith.constant 5.000000e-01 : f32
    %47 = arith.cmpf ole, %3, %cst_2 : f32
    %48 = arith.extui %47 : i1 to i32
    %c0_i32_3 = arith.constant 0 : i32
    %49 = arith.cmpi ne, %48, %c0_i32_3 : i32
    scf.if %49 {
      %c0 = arith.constant 0 : index
      %c0_9 = arith.constant 0 : index
      %c0_10 = arith.constant 0 : index
      %58 = vector.load %arg3[%c0, %c0_9, %c0_10] : memref<1x96x32xf32, #tpu.memory_space<vmem>>, vector<1x32x32xf32>
      %59 = vector.shape_cast %58 : vector<1x32x32xf32> to vector<32x32xf32>
      %c0_11 = arith.constant 0 : index
      %c32 = arith.constant 32 : index
      %c0_12 = arith.constant 0 : index
      %60 = vector.load %arg3[%c0_11, %c32, %c0_12] : memref<1x96x32xf32, #tpu.memory_space<vmem>>, vector<1x32x32xf32>
      %61 = vector.shape_cast %60 : vector<1x32x32xf32> to vector<32x32xf32>
      %c0_13 = arith.constant 0 : index
      %c64 = arith.constant 64 : index
      %c0_14 = arith.constant 0 : index
      %62 = vector.load %arg3[%c0_13, %c64, %c0_14] : memref<1x96x32xf32, #tpu.memory_space<vmem>>, vector<1x32x32xf32>
      %63 = vector.shape_cast %62 : vector<1x32x32xf32> to vector<32x32xf32>
      %cst_15 = arith.constant 2.990000e-01 : f32
      %64 = vector.broadcast %cst_15 : f32 to vector<32x32xf32>
      %65 = arith.mulf %64, %59 : vector<32x32xf32>
      %cst_16 = arith.constant 5.870000e-01 : f32
      %66 = vector.broadcast %cst_16 : f32 to vector<32x32xf32>
      %67 = arith.mulf %66, %61 : vector<32x32xf32>
      %68 = arith.addf %65, %67 : vector<32x32xf32>
      %cst_17 = arith.constant 1.140000e-01 : f32
      %69 = vector.broadcast %cst_17 : f32 to vector<32x32xf32>
      %70 = arith.mulf %69, %63 : vector<32x32xf32>
      %71 = arith.addf %68, %70 : vector<32x32xf32>
      %72 = vector.broadcast %18 : f32 to vector<32x32xf32>
      %73 = arith.mulf %71, %72 : vector<32x32xf32>
      %74 = vector.broadcast %43 : f32 to vector<32x32xf32>
      %75 = arith.mulf %74, %59 : vector<32x32xf32>
      %76 = arith.addf %75, %73 : vector<32x32xf32>
      %77 = vector.broadcast %27 : f32 to vector<32x32xf32>
      %78 = arith.mulf %76, %77 : vector<32x32xf32>
      %79 = vector.broadcast %36 : f32 to vector<32x32xf32>
      %80 = arith.addf %78, %79 : vector<32x32xf32>
      %c0_18 = arith.constant 0 : index
      %c0_19 = arith.constant 0 : index
      %c0_20 = arith.constant 0 : index
      %81 = vector.load %arg6[%c0_18, %c0_19, %c0_20] : memref<1x96x32xf32, #tpu.memory_space<vmem>>, vector<1x32x32xf32>
      %82 = vector.shape_cast %81 : vector<1x32x32xf32> to vector<32x32xf32>
      %83 = vector.shape_cast %80 : vector<32x32xf32> to vector<1x32x32xf32>
      tpu.vector_store %arg6[%c0_18, %c0_19, %c0_20], %83 {strides = array<i32>} : memref<1x96x32xf32, #tpu.memory_space<vmem>>, vector<1x32x32xf32>,
      %84 = vector.broadcast %43 : f32 to vector<32x32xf32>
      %85 = arith.mulf %84, %61 : vector<32x32xf32>
      %86 = arith.addf %85, %73 : vector<32x32xf32>
      %87 = vector.broadcast %30 : f32 to vector<32x32xf32>
      %88 = arith.mulf %86, %87 : vector<32x32xf32>
      %89 = vector.broadcast %39 : f32 to vector<32x32xf32>
      %90 = arith.addf %88, %89 : vector<32x32xf32>
      %c0_21 = arith.constant 0 : index
      %c32_22 = arith.constant 32 : index
      %c0_23 = arith.constant 0 : index
      %91 = vector.load %arg6[%c0_21, %c32_22, %c0_23] : memref<1x96x32xf32, #tpu.memory_space<vmem>>, vector<1x32x32xf32>
      %92 = vector.shape_cast %91 : vector<1x32x32xf32> to vector<32x32xf32>
      %93 = vector.shape_cast %90 : vector<32x32xf32> to vector<1x32x32xf32>
      tpu.vector_store %arg6[%c0_21, %c32_22, %c0_23], %93 {strides = array<i32>} : memref<1x96x32xf32, #tpu.memory_space<vmem>>, vector<1x32x32xf32>,
      %94 = vector.broadcast %43 : f32 to vector<32x32xf32>
      %95 = arith.mulf %94, %63 : vector<32x32xf32>
      %96 = arith.addf %95, %73 : vector<32x32xf32>
      %97 = vector.broadcast %33 : f32 to vector<32x32xf32>
      %98 = arith.mulf %96, %97 : vector<32x32xf32>
      %99 = vector.broadcast %42 : f32 to vector<32x32xf32>
      %100 = arith.addf %98, %99 : vector<32x32xf32>
      %c0_24 = arith.constant 0 : index
      %c64_25 = arith.constant 64 : index
      %c0_26 = arith.constant 0 : index
      %101 = vector.load %arg6[%c0_24, %c64_25, %c0_26] : memref<1x96x32xf32, #tpu.memory_space<vmem>>, vector<1x32x32xf32>
      %102 = vector.shape_cast %101 : vector<1x32x32xf32> to vector<32x32xf32>
      %103 = vector.shape_cast %100 : vector<32x32xf32> to vector<1x32x32xf32>
      tpu.vector_store %arg6[%c0_24, %c64_25, %c0_26], %103 {strides = array<i32>} : memref<1x96x32xf32, #tpu.memory_space<vmem>>, vector<1x32x32xf32>,
    } else {
    }
    %cst_4 = arith.constant 5.000000e-01 : f32
    %50 = arith.cmpf ogt, %24, %cst_4 : f32
    %51 = arith.extui %50 : i1 to i32
    %c0_i32_5 = arith.constant 0 : i32
    %52 = arith.cmpi ne, %51, %c0_i32_5 : i32
    scf.if %52 {
      %c0 = arith.constant 0 : index
      %c0_9 = arith.constant 0 : index
      %c0_10 = arith.constant 0 : index
      %58 = vector.load %arg6[%c0, %c0_9, %c0_10] : memref<1x96x32xf32, #tpu.memory_space<vmem>>, vector<1x96x32xf32>
      %59 = vector.shape_cast %58 : vector<1x96x32xf32> to vector<96x32xf32>
      %60 = arith.truncf %59 : vector<96x32xf32> to vector<96x32xbf16>
      %c0_11 = arith.constant 0 : index
      %c0_12 = arith.constant 0 : index
      %c0_13 = arith.constant 0 : index
      %61 = vector.load %arg4[%c0_11, %c0_12, %c0_13] : memref<1x32x32xbf16, #tpu.memory_space<vmem>>, vector<1x32x32xbf16>
      %62 = vector.shape_cast %61 : vector<1x32x32xbf16> to vector<32x32xbf16>
      %cst_14 = arith.constant dense<0.000000e+00> : vector<96x32xf32>
      %63 = tpu.matmul %60, %62, %cst_14 {dimension_numbers = #tpu.dot_dimension_numbers<[1], [0], [0], [1], [0, 0, 1, 1], [], []>} : vector<96x32xbf16>, vector<32x32xbf16>, vector<96x32xf32> -> vector<96x32xf32>
      %c0_15 = arith.constant 0 : index
      %c0_16 = arith.constant 0 : index
      %c0_17 = arith.constant 0 : index
      %64 = vector.load %arg5[%c0_15, %c0_16, %c0_17] : memref<1x32x32xbf16, #tpu.memory_space<vmem>>, vector<1x32x32xbf16>
      %65 = vector.shape_cast %64 : vector<1x32x32xbf16> to vector<32x32xbf16>
      %66 = vector.extract_strided_slice %63 {offsets = [0, 0], sizes = [32, 32], strides = [1, 1]} : vector<96x32xf32> to vector<32x32xf32>
      %67 = arith.truncf %66 : vector<32x32xf32> to vector<32x32xbf16>
      %cst_18 = arith.constant dense<0.000000e+00> : vector<32x32xf32>
      %68 = tpu.matmul %65, %67, %cst_18 {dimension_numbers = #tpu.dot_dimension_numbers<[1], [0], [0], [1], [0, 0, 1, 1], [], []>} : vector<32x32xbf16>, vector<32x32xbf16>, vector<32x32xf32> -> vector<32x32xf32>
      %c0_19 = arith.constant 0 : index
      %c0_20 = arith.constant 0 : index
      %c0_21 = arith.constant 0 : index
      %69 = vector.load %arg6[%c0_19, %c0_20, %c0_21] : memref<1x96x32xf32, #tpu.memory_space<vmem>>, vector<1x32x32xf32>
      %70 = vector.shape_cast %69 : vector<1x32x32xf32> to vector<32x32xf32>
      %71 = vector.shape_cast %68 : vector<32x32xf32> to vector<1x32x32xf32>
      tpu.vector_store %arg6[%c0_19, %c0_20, %c0_21], %71 {strides = array<i32>} : memref<1x96x32xf32, #tpu.memory_space<vmem>>, vector<1x32x32xf32>,
      %72 = vector.extract_strided_slice %63 {offsets = [32, 0], sizes = [32, 32], strides = [1, 1]} : vector<96x32xf32> to vector<32x32xf32>
      %73 = arith.truncf %72 : vector<32x32xf32> to vector<32x32xbf16>
      %cst_22 = arith.constant dense<0.000000e+00> : vector<32x32xf32>
      %74 = tpu.matmul %65, %73, %cst_22 {dimension_numbers = #tpu.dot_dimension_numbers<[1], [0], [0], [1], [0, 0, 1, 1], [], []>} : vector<32x32xbf16>, vector<32x32xbf16>, vector<32x32xf32> -> vector<32x32xf32>
      %c0_23 = arith.constant 0 : index
      %c32 = arith.constant 32 : index
      %c0_24 = arith.constant 0 : index
      %75 = vector.load %arg6[%c0_23, %c32, %c0_24] : memref<1x96x32xf32, #tpu.memory_space<vmem>>, vector<1x32x32xf32>
      %76 = vector.shape_cast %75 : vector<1x32x32xf32> to vector<32x32xf32>
      %77 = vector.shape_cast %74 : vector<32x32xf32> to vector<1x32x32xf32>
      tpu.vector_store %arg6[%c0_23, %c32, %c0_24], %77 {strides = array<i32>} : memref<1x96x32xf32, #tpu.memory_space<vmem>>, vector<1x32x32xf32>,
      %78 = vector.extract_strided_slice %63 {offsets = [64, 0], sizes = [32, 32], strides = [1, 1]} : vector<96x32xf32> to vector<32x32xf32>
      %79 = arith.truncf %78 : vector<32x32xf32> to vector<32x32xbf16>
      %cst_25 = arith.constant dense<0.000000e+00> : vector<32x32xf32>
      %80 = tpu.matmul %65, %79, %cst_25 {dimension_numbers = #tpu.dot_dimension_numbers<[1], [0], [0], [1], [0, 0, 1, 1], [], []>} : vector<32x32xbf16>, vector<32x32xbf16>, vector<32x32xf32> -> vector<32x32xf32>
      %c0_26 = arith.constant 0 : index
      %c64 = arith.constant 64 : index
      %c0_27 = arith.constant 0 : index
      %81 = vector.load %arg6[%c0_26, %c64, %c0_27] : memref<1x96x32xf32, #tpu.memory_space<vmem>>, vector<1x32x32xf32>
      %82 = vector.shape_cast %81 : vector<1x32x32xf32> to vector<32x32xf32>
      %83 = vector.shape_cast %80 : vector<32x32xf32> to vector<1x32x32xf32>
      tpu.vector_store %arg6[%c0_26, %c64, %c0_27], %83 {strides = array<i32>} : memref<1x96x32xf32, #tpu.memory_space<vmem>>, vector<1x32x32xf32>,
    } else {
    }
    %cst_6 = arith.constant 5.000000e-01 : f32
    %53 = arith.cmpf ogt, %21, %cst_6 : f32
    %cst_7 = arith.constant 5.000000e-01 : f32
    %54 = arith.cmpf ole, %24, %cst_7 : f32
    %55 = arith.andi %53, %54 : i1
    %56 = arith.extui %55 : i1 to i32
    %c0_i32_8 = arith.constant 0 : i32
    %57 = arith.cmpi ne, %56, %c0_i32_8 : i32
    scf.if %57 {
      %58 = tpu.iota {dimensions = array<i32: 0>} : vector<32x32xi32>
      %59 = tpu.iota {dimensions = array<i32: 1>} : vector<32x32xi32>
      %60 = arith.addi %58, %59 : vector<32x32xi32>
      %c31_i32 = arith.constant 31 : i32
      %61 = vector.broadcast %c31_i32 : i32 to vector<32x32xi32>
      %62 = arith.cmpi eq, %60, %61 : vector<32x32xi32>
      %63 = arith.extui %62 : vector<32x32xi1> to vector<32x32xi32>
      %64 = arith.sitofp %63 : vector<32x32xi32> to vector<32x32xf32>
      %c0 = arith.constant 0 : index
      %c0_9 = arith.constant 0 : index
      %c0_10 = arith.constant 0 : index
      %65 = vector.load %arg6[%c0, %c0_9, %c0_10] : memref<1x96x32xf32, #tpu.memory_space<vmem>>, vector<1x96x32xf32>
      %66 = vector.shape_cast %65 : vector<1x96x32xf32> to vector<96x32xf32>
      %cst_11 = arith.constant dense<0.000000e+00> : vector<96x32xf32>
      %67 = tpu.matmul %66, %64, %cst_11 {dimension_numbers = #tpu.dot_dimension_numbers<[1], [0], [0], [1], [0, 0, 1, 1], [], []>, precision = #tpu.contract_precision<fp32>} : vector<96x32xf32>, vector<32x32xf32>, vector<96x32xf32> -> vector<96x32xf32>
      %c0_12 = arith.constant 0 : index
      %c0_13 = arith.constant 0 : index
      %c0_14 = arith.constant 0 : index
      %68 = vector.load %arg6[%c0_12, %c0_13, %c0_14] : memref<1x96x32xf32, #tpu.memory_space<vmem>>, vector<1x96x32xf32>
      %69 = vector.shape_cast %68 : vector<1x96x32xf32> to vector<96x32xf32>
      %70 = vector.shape_cast %67 : vector<96x32xf32> to vector<1x96x32xf32>
      tpu.vector_store %arg6[%c0_12, %c0_13, %c0_14], %70 {strides = array<i32>} : memref<1x96x32xf32, #tpu.memory_space<vmem>>, vector<1x96x32xf32>,
    } else {
    }
    return
  }
  func.func @transform_0(%arg0: i32, %arg1: memref<4xi32, #tpu.memory_space<smem>>) -> i32 {
    %c0_i32 = arith.constant 0 : i32
    %c0_i32_0 = arith.constant 0 : i32
    return %c0_i32 : i32
  }
  func.func @transform_1(%arg0: i32, %arg1: memref<4xi32, #tpu.memory_space<smem>>) -> (i32, i32, i32) {
    %c0_i32 = arith.constant 0 : i32
    %c0_i32_0 = arith.constant 0 : i32
    %c0_i32_1 = arith.constant 0 : i32
    return %arg0, %c0_i32, %c0_i32_0 : i32, i32, i32
  }
  func.func @transform_2(%arg0: i32, %arg1: memref<4xi32, #tpu.memory_space<smem>>) -> (i32, i32, i32) {
    %0 = arith.index_cast %arg0 : i32 to index
    %1 = memref.load %arg1[%0] : memref<4xi32, #tpu.memory_space<smem>>
    %c0_i32 = arith.constant 0 : i32
    %c0_i32_0 = arith.constant 0 : i32
    %c0_i32_1 = arith.constant 0 : i32
    return %1, %c0_i32, %c0_i32_0 : i32, i32, i32
  }
  func.func @transform_3(%arg0: i32, %arg1: memref<4xi32, #tpu.memory_space<smem>>) -> (i32, i32, i32) {
    %0 = arith.index_cast %arg0 : i32 to index
    %1 = memref.load %arg1[%0] : memref<4xi32, #tpu.memory_space<smem>>
    %c0_i32 = arith.constant 0 : i32
    %c0_i32_0 = arith.constant 0 : i32
    %c0_i32_1 = arith.constant 0 : i32
    return %1, %c0_i32, %c0_i32_0 : i32, i32, i32
  }
  func.func @transform_4(%arg0: i32, %arg1: memref<4xi32, #tpu.memory_space<smem>>) -> (i32, i32, i32) {
    %c0_i32 = arith.constant 0 : i32
    %c0_i32_0 = arith.constant 0 : i32
    %c0_i32_1 = arith.constant 0 : i32
    return %arg0, %c0_i32, %c0_i32_0 : i32, i32, i32
  }
}

</mosaic_0001>

<llo_original>
// kernel: simclr_pretrain_post_transform.1
$region0: #{simclr_pretrain_post_transform.1}
  #allocation0 [shape = 'u32[]', space=smem, size = 0x4, offset = 0x4, fixed_abs, tag = 'smem constant byte address 0x4 - core index']
  #allocation1 [shape = 'u32[144,128]{1,0:T(1,128)}', space=vmem, size = 0x12000, scoped, tag = 'internal scratch']
  #allocation2 [shape = 's32[1]{0}', space=sflag, size = 0x4, scoped, tag = 'scoped memory for simclr_pretrain_post_transform.1']
  #allocation3 [shape = 'u8[512]{0}', space=smem, size = 0x200, scoped, tag = 'prefetched SMEM operand 0']
  %s0 = inlined_call_operand.vmem [shape: s32[4], index: 0, kind: input, shape index: {}]
  %s1 = inlined_call_operand.vmem [shape: f32[64], index: 1, kind: input, shape index: {}]
  %s2 = inlined_call_operand.hbm [shape: f32[4,96,32], index: 2, kind: input, shape index: {}]
  %s3 = inlined_call_operand.hbm [shape: bf16[4,32,32], index: 3, kind: input, shape index: {}]
  %s4 = inlined_call_operand.hbm [shape: bf16[4,32,32], index: 4, kind: input, shape index: {}]
  %s5 = inlined_call_operand.hbm [shape: f32[4,96,32], index: 5, kind: output, shape index: {}]
  %s6 = sld [smem:[#allocation0]]
  $region95: #{simclr_pretrain_post_transform.1} parent=0
    _
  %s8 = ssub.s32 1, %s6
  %s9 = scalar_select 0, %s8, %s6
  %s10 = sshll.u32 %s0, 4
  %s11 = int_to_ptr.vmem [resolvable:$true] %s10
  %13 = dma.vmem_to_smem %s11, 16, [#allocation3], [#allocation2]
  %14 = dma.done [#allocation2], 16
  %15 = sfence
  $region1: #{simclr_pretrain_post_transform.1} parent=0
    #allocation4 [shape = 'u8[512]{0}', space=smem, size = 0x200, scoped, tag = 'input window, operand 1, single buffered']
    #allocation5 [shape = 's32[2]{0}', space=sflag, size = 0x8, scoped, tag = 'scoped memory for simclr_pretrain_post_transform.1']
    #allocation6 [shape = 's32[2]{0}', space=sflag, size = 0x8, scoped, tag = 'scoped memory for simclr_pretrain_post_transform.1']
    #allocation7 [shape = 's32[2]{0}', space=sflag, size = 0x8, scoped, tag = 'scoped memory for simclr_pretrain_post_transform.1']
    #allocation8 [shape = 'u8[98304]{0}', space=vmem, size = 0x18000, scoped, tag = 'input window, operand 2']
    #allocation9 [shape = 'u8[16384]{0}', space=vmem, size = 0x4000, scoped, tag = 'input window, operand 3']
    #allocation10 [shape = 's32[2]{0}', space=sflag, size = 0x8, scoped, tag = 'scoped memory for simclr_pretrain_post_transform.1']
    #allocation11 [shape = 'u8[16384]{0}', space=vmem, size = 0x4000, scoped, tag = 'input window, operand 4']
    #allocation12 [shape = 'u8[98304]{0}', space=vmem, size = 0x18000, scoped, tag = 'output window, operand 0']
    %16 = vsyncpa [#allocation7], 0
    %17 = vsyncpa [#allocation5], 0
    %s18 = scalar_lea.sflag [#allocation5], 1
    %19 = vsyncpa %s18, 0
    %20 = vsyncpa [#allocation10], 0
    %s21 = scalar_lea.sflag [#allocation10], 1
    %22 = vsyncpa %s21, 0
    %23 = vsyncpa [#allocation6], 0
    %s24 = scalar_lea.sflag [#allocation6], 1
    %25 = vsyncpa %s24, 0
    loop: start=0, step=1, limit=6
    $region2: #{simclr_pretrain_post_transform.1} parent=1 // loop_pre_header
      _
    $region3: #{simclr_pretrain_post_transform.1} parent=1 // loop_header
      %s27 = sphi 0, %s31
      %p28 = scmp.ge.s32.totalorder %s27, 6
      %s35 = sphi 0, %s35
      %s37 = sphi 0, %s35
      %s38 = sphi 0, %s37
      %s52 = sphi 0, %s38
      %s58 = sphi 0, %s60
      %s61 = sphi 0, %s58
      %s62 = sphi 0, %s61
      %s78 = sphi 0, %s62
      %s86 = sphi 0, %s88
      %s89 = sphi 0, %s86
      %s90 = sphi 0, %s89
      %s106 = sphi 0, %s90
      %s114 = sphi 0, %s116
      %s117 = sphi 0, %s114
      %s118 = sphi 0, %s117
      %s134 = sphi 0, %s118
      %s140 = sphi 0, %s142
      %s143 = sphi 0, %s140
      %s144 = sphi 0, %s143
      %s160 = sphi 0, %s144
    $region4: #{simclr_pretrain_post_transform.1} parent=1 // loop_header_branch
      %30 = sbr.rel (%p28) target = $region8
    $region5: #{simclr_pretrain_post_transform.1} parent=1 // loop_body
      %s32 = ssub.s32 %s27, 1
      %s33 = ssub.s32 %s27, 2
      %s34 = sadd.s32 %s27, 1
      %s36 = sadd.s32 %s35, 1
      %p39 = scmp.eq.s32.totalorder %s27, 3
      %p40 = scmp.ne.s32.totalorder %s35, %s37
      %p41 = scmp.eq.s32.totalorder %s27, 0
      %p42 = por %p40, %p41
      %p43 = scmp.ne.s32.totalorder %s35, %s37
      %p44 = scmp.eq.s32.totalorder %s32, 3
      %p45 = por %p43, %p44
      %p46 = scmp.ne.s32.totalorder %s37, %s38
      %p47 = scmp.eq.s32.totalorder %s32, 0
      %p48 = por %p46, %p47
      %p49 = scmp.ne.s32.totalorder %s37, %s38
      %p50 = scmp.eq.s32.totalorder %s33, 3
      %p51 = por %p49, %p50
      %p53 = scmp.ne.s32.totalorder %s38, %s52
      %p54 = scmp.eq.s32.totalorder %s33, 0
      %p55 = por %p53, %p54
      %s56 = ssub.s32 %s27, %s34
      %p57 = scmp.eq.s32.totalorder %s56, 0
      %s59 = sadd.s32 %s58, 1
      %s60 = scalar_select %p57, %s58, %s59
      %p63 = pneg %p57
      %p64 = scmp.eq.s32.totalorder %s27, 3
      %p65 = por %p63, %p64
      %p66 = scmp.ne.s32.totalorder %s58, %s61
      %p67 = scmp.eq.s32.totalorder %s27, 0
      %p68 = por %p66, %p67
      %p69 = scmp.ne.s32.totalorder %s58, %s61
      %p70 = scmp.eq.s32.totalorder %s32, 3
      %p71 = por %p69, %p70
      %p72 = scmp.ne.s32.totalorder %s61, %s62
      %p73 = scmp.eq.s32.totalorder %s32, 0
      %p74 = por %p72, %p73
      %p75 = scmp.ne.s32.totalorder %s61, %s62
      %p76 = scmp.eq.s32.totalorder %s33, 3
      %p77 = por %p75, %p76
      %p79 = scmp.ne.s32.totalorder %s62, %s78
      %p80 = scmp.eq.s32.totalorder %s33, 0
      %p81 = por %p79, %p80
      %s82 = sld [smem:[#allocation3 + %s27]]
      %s83 = sld [smem:[#allocation3 + %s34]]
      %s84 = ssub.s32 %s82, %s83
      %p85 = scmp.eq.s32.totalorder %s84, 0
      %s87 = sadd.s32 %s86, 1
      %s88 = scalar_select %p85, %s86, %s87
      %p91 = pneg %p85
      %p92 = scmp.eq.s32.totalorder %s27, 3
      %p93 = por %p91, %p92
      %p94 = scmp.ne.s32.totalorder %s86, %s89
      %p95 = scmp.eq.s32.totalorder %s27, 0
      %p96 = por %p94, %p95
      %p97 = scmp.ne.s32.totalorder %s86, %s89
      %p98 = scmp.eq.s32.totalorder %s32, 3
      %p99 = por %p97, %p98
      %p100 = scmp.ne.s32.totalorder %s89, %s90
      %p101 = scmp.eq.s32.totalorder %s32, 0
      %p102 = por %p100, %p101
      %p103 = scmp.ne.s32.totalorder %s89, %s90
      %p104 = scmp.eq.s32.totalorder %s33, 3
      %p105 = por %p103, %p104
      %p107 = scmp.ne.s32.totalorder %s90, %s106
      %p108 = scmp.eq.s32.totalorder %s33, 0
      %p109 = por %p107, %p108
      %s110 = sld [smem:[#allocation3 + %s27]]
      %s111 = sld [smem:[#allocation3 + %s34]]
      %s112 = ssub.s32 %s110, %s111
      %p113 = scmp.eq.s32.totalorder %s112, 0
      %s115 = sadd.s32 %s114, 1
      %s116 = scalar_select %p113, %s114, %s115
      %p119 = pneg %p113
      %p120 = scmp.eq.s32.totalorder %s27, 3
      %p121 = por %p119, %p120
      %p122 = scmp.ne.s32.totalorder %s114, %s117
      %p123 = scmp.eq.s32.totalorder %s27, 0
      %p124 = por %p122, %p123
      %p125 = scmp.ne.s32.totalorder %s114, %s117
      %p126 = scmp.eq.s32.totalorder %s32, 3
      %p127 = por %p125, %p126
      %p128 = scmp.ne.s32.totalorder %s117, %s118
      %p129 = scmp.eq.s32.totalorder %s32, 0
      %p130 = por %p128, %p129
      %p131 = scmp.ne.s32.totalorder %s117, %s118
      %p132 = scmp.eq.s32.totalorder %s33, 3
      %p133 = por %p131, %p132
      %p135 = scmp.ne.s32.totalorder %s118, %s134
      %p136 = scmp.eq.s32.totalorder %s33, 0
      %p137 = por %p135, %p136
      %s138 = ssub.s32 %s27, %s34
      %p139 = scmp.eq.s32.totalorder %s138, 0
      %s141 = sadd.s32 %s140, 1
      %s142 = scalar_select %p139, %s140, %s141
      %p145 = pneg %p139
      %p146 = scmp.eq.s32.totalorder %s27, 3
      %p147 = por %p145, %p146
      %p148 = scmp.ne.s32.totalorder %s140, %s143
      %p149 = scmp.eq.s32.totalorder %s27, 0
      %p150 = por %p148, %p149
      %p151 = scmp.ne.s32.totalorder %s140, %s143
      %p152 = scmp.eq.s32.totalorder %s32, 3
      %p153 = por %p151, %p152
      %p154 = scmp.ne.s32.totalorder %s143, %s144
      %p155 = scmp.eq.s32.totalorder %s32, 0
      %p156 = por %p154, %p155
      %p157 = scmp.ne.s32.totalorder %s143, %s144
      %p158 = scmp.eq.s32.totalorder %s33, 3
      %p159 = por %p157, %p158
      %p161 = scmp.ne.s32.totalorder %s144, %s160
      %p162 = scmp.eq.s32.totalorder %s33, 0
      %p163 = por %p161, %p162
      %p164 = scmp.le.s32.totalorder 1, %s27
      %p165 = scmp.lt.s32.totalorder %s27, 5
      %p166 = pnand %p164, %p165
      %p167 = pneg %p166
      // Predicated region
      $region9: #{simclr_pretrain_post_transform.1} parent=5 // pred_check
        _
      $region10: #{simclr_pretrain_post_transform.1} parent=5 // pred_check_branch
        %169 = sbr.rel (%p166) target = $region12
      $region11: #{simclr_pretrain_post_transform.1} parent=5 // pred_region
        %s170 = ssub.s32 %s27, 1
        // Predicated region
        $region13: #{simclr_pretrain_post_transform.1} parent=11 // pred_check
          %p171 = pneg %p48
        $region14: #{simclr_pretrain_post_transform.1} parent=11 // pred_check_branch
          %173 = sbr.rel (%p171) target = $region16
        $region15: #{simclr_pretrain_post_transform.1} parent=11 // pred_region
          %s175 = ssub.s32 16, 16
          %176 = vsyncadd [#allocation7], %s175
          %s178 = sshll.u32 %s1, 4
          %s179 = int_to_ptr.vmem [resolvable:$true] %s178
          %181 = dma.vmem_to_smem %s179, 16, [#allocation4], [#allocation7]
        $region16: #{simclr_pretrain_post_transform.1} parent=11 // pred_fallthru
          _
      $region12: #{simclr_pretrain_post_transform.1} parent=5 // pred_fallthru
        _
      %p182 = scmp.lt.s32.totalorder %s27, 4
      // Predicated region
      $region17: #{simclr_pretrain_post_transform.1} parent=5 // pred_check
        %p183 = pneg %p182
      $region18: #{simclr_pretrain_post_transform.1} parent=5 // pred_check_branch
        %185 = sbr.rel (%p183) target = $region20
      $region19: #{simclr_pretrain_post_transform.1} parent=5 // pred_region
        // Predicated region
        $region21: #{simclr_pretrain_post_transform.1} parent=19 // pred_check
          %p186 = pneg %p68
        $region22: #{simclr_pretrain_post_transform.1} parent=19 // pred_check_branch
          %188 = sbr.rel (%p186) target = $region24
        $region23: #{simclr_pretrain_post_transform.1} parent=19 // pred_region
          %s189 = sand.u32 %s58, 1
          %s190 = scalar_lea.sflag [#allocation5], %s189
          %s191 = sand.u32 %s58, 1
          %s192 = smul.addr %s191, 96
          %s193 = scalar_lea.vmem [#allocation8], %s192
          %s195 = ssub.s32 1536, 1536
          %196 = vsyncadd %s190, %s195
          %s197 = smul.addr %s27, 12
          %s198 = smul.addr %s197, 128
          %s199 = scalar_lea.hbm %s2, %s198
          %s200 = sshll.u32 %s193, 4
          %s201 = int_to_ptr.vmem [resolvable:$true] %s200
          %206 = dma.hbm_to_vmem [thread:$0]  %s199, 1536, %s201, %s190, 128, 128, 8
        $region24: #{simclr_pretrain_post_transform.1} parent=19 // pred_fallthru
          _
        // Predicated region
        $region25: #{simclr_pretrain_post_transform.1} parent=19 // pred_check
          %p207 = pneg %p96
        $region26: #{simclr_pretrain_post_transform.1} parent=19 // pred_check_branch
          %209 = sbr.rel (%p207) target = $region28
        $region27: #{simclr_pretrain_post_transform.1} parent=19 // pred_region
          %s210 = sand.u32 %s27, 1
          %s211 = scalar_lea.sflag [#allocation10], %s210
          %s212 = sand.u32 %s86, 1
          %s213 = smul.addr %s212, 16
          %s214 = scalar_lea.vmem [#allocation9], %s213
          %s215 = sld [smem:[#allocation3 + %s27]]
          %s217 = ssub.s32 256, 256
          %218 = vsyncadd %s211, %s217
          %s219 = smul.addr %s215, 4
          %s220 = smul.addr %s219, 64
          %s221 = scalar_lea.hbm %s3, %s220
          %s222 = sshll.u32 %s214, 4
          %s223 = int_to_ptr.vmem [resolvable:$true] %s222
          %228 = dma.hbm_to_vmem [thread:$0]  %s221, 256, %s223, %s211, 64, 64, 4
        $region28: #{simclr_pretrain_post_transform.1} parent=19 // pred_fallthru
          _
        // Predicated region
        $region29: #{simclr_pretrain_post_transform.1} parent=19 // pred_check
          %p229 = pneg %p124
        $region30: #{simclr_pretrain_post_transform.1} parent=19 // pred_check_branch
          %231 = sbr.rel (%p229) target = $region32
        $region31: #{simclr_pretrain_post_transform.1} parent=19 // pred_region
          %s232 = sand.u32 %s27, 1
          %s233 = scalar_lea.sflag [#allocation10], %s232
          %s234 = sand.u32 %s114, 1
          %s235 = smul.addr %s234, 16
          %s236 = scalar_lea.vmem [#allocation11], %s235
          %s237 = sld [smem:[#allocation3 + %s27]]
          %s239 = ssub.s32 256, 256
          %240 = vsyncadd %s233, %s239
          %s241 = smul.addr %s237, 4
          %s242 = smul.addr %s241, 64
          %s243 = scalar_lea.hbm %s4, %s242
          %s244 = sshll.u32 %s236, 4
          %s245 = int_to_ptr.vmem [resolvable:$true] %s244
          %250 = dma.hbm_to_vmem [thread:$0]  %s243, 256, %s245, %s233, 64, 64, 4
        $region32: #{simclr_pretrain_post_transform.1} parent=19 // pred_fallthru
          _
      $region20: #{simclr_pretrain_post_transform.1} parent=5 // pred_fallthru
        _
      %p251 = scmp.le.s32.totalorder 1, %s27
      %p252 = scmp.lt.s32.totalorder %s27, 5
      %p253 = pnand %p251, %p252
      %p254 = pneg %p253
      // Predicated region
      $region33: #{simclr_pretrain_post_transform.1} parent=5 // pred_check
        _
      $region34: #{simclr_pretrain_post_transform.1} parent=5 // pred_check_branch
        %256 = sbr.rel (%p253) target = $region36
      $region35: #{simclr_pretrain_post_transform.1} parent=5 // pred_region
        %s257 = ssub.s32 %s27, 1
        // Predicated region
        $region37: #{simclr_pretrain_post_transform.1} parent=35 // pred_check
          %p258 = pneg %p48
        $region38: #{simclr_pretrain_post_transform.1} parent=35 // pred_check_branch
          %260 = sbr.rel (%p258) target = $region40
        $region39: #{simclr_pretrain_post_transform.1} parent=35 // pred_region
          %261 = dma.done [#allocation7], 16
        $region40: #{simclr_pretrain_post_transform.1} parent=35 // pred_fallthru
          _
        %s262 = sand.u32 %s61, 1
        %s263 = scalar_lea.sflag [#allocation5], %s262
        %s264 = sand.u32 %s61, 1
        %s265 = smul.addr %s264, 96
        %s266 = scalar_lea.vmem [#allocation8], %s265
        // Predicated region
        $region41: #{simclr_pretrain_post_transform.1} parent=35 // pred_check
          %p267 = pneg %p74
        $region42: #{simclr_pretrain_post_transform.1} parent=35 // pred_check_branch
          %269 = sbr.rel (%p267) target = $region44
        $region43: #{simclr_pretrain_post_transform.1} parent=35 // pred_region
          %270 = dma.done %s263, 1536
        $region44: #{simclr_pretrain_post_transform.1} parent=35 // pred_fallthru
          _
        %s271 = sand.u32 %s32, 1
        %s272 = scalar_lea.sflag [#allocation10], %s271
        %s273 = sand.u32 %s89, 1
        %s274 = smul.addr %s273, 16
        %s275 = scalar_lea.vmem [#allocation9], %s274
        // Predicated region
        $region45: #{simclr_pretrain_post_transform.1} parent=35 // pred_check
          %p276 = pneg %p102
        $region46: #{simclr_pretrain_post_transform.1} parent=35 // pred_check_branch
          %278 = sbr.rel (%p276) target = $region48
        $region47: #{simclr_pretrain_post_transform.1} parent=35 // pred_region
          %279 = dma.done %s272, 256
        $region48: #{simclr_pretrain_post_transform.1} parent=35 // pred_fallthru
          _
        %s280 = sand.u32 %s32, 1
        %s281 = scalar_lea.sflag [#allocation10], %s280
        %s282 = sand.u32 %s117, 1
        %s283 = smul.addr %s282, 16
        %s284 = scalar_lea.vmem [#allocation11], %s283
        // Predicated region
        $region49: #{simclr_pretrain_post_transform.1} parent=35 // pred_check
          %p285 = pneg %p130
        $region50: #{simclr_pretrain_post_transform.1} parent=35 // pred_check_branch
          %287 = sbr.rel (%p285) target = $region52
        $region51: #{simclr_pretrain_post_transform.1} parent=35 // pred_region
          %288 = dma.done %s281, 256
        $region52: #{simclr_pretrain_post_transform.1} parent=35 // pred_fallthru
          _
        %289 = sfence
        %p290 = pneg %p48
        %p291 = pneg %p45
        %s292 = sand.u32 %s61, 1
        %s293 = scalar_lea.sflag [#allocation5], %s292
        %s294 = sand.u32 %s61, 1
        %s295 = smul.addr %s294, 96
        %s296 = scalar_lea.vmem [#allocation8], %s295
        %p297 = pneg %p74
        %p298 = pneg %p71
        %s299 = sand.u32 %s32, 1
        %s300 = scalar_lea.sflag [#allocation10], %s299
        %s301 = sand.u32 %s89, 1
        %s302 = smul.addr %s301, 16
        %s303 = scalar_lea.vmem [#allocation9], %s302
        %p304 = pneg %p102
        %p305 = pneg %p99
        %s306 = sand.u32 %s32, 1
        %s307 = scalar_lea.sflag [#allocation10], %s306
        %s308 = sand.u32 %s117, 1
        %s309 = smul.addr %s308, 16
        %s310 = scalar_lea.vmem [#allocation11], %s309
        %p311 = pneg %p130
        %p312 = pneg %p127
        %p313 = pneg %p156
        %p314 = pneg %p153
        %s315 = sand.u32 %s143, 1
        %s316 = scalar_lea.sflag [#allocation6], %s315
        %s317 = sand.u32 %s143, 1
        %s318 = smul.addr %s317, 96
        %s319 = scalar_lea.vmem [#allocation12], %s318
        %s320 = sld [smem:[#allocation3 + %s32]]
        %s321 = sld [smem:[#allocation3 + %s32]]
        %s323 = smul.u32 %s32, 16
        %s324 = sld [smem:[#allocation4 + %s323]]
        %s325 = sadd.s32 %s323, 1
        %s326 = sld [smem:[#allocation4 + %s325]]
        %s327 = sadd.s32 %s323, 2
        %s328 = sld [smem:[#allocation4 + %s327]]
        %s329 = sadd.s32 %s323, 3
        %s330 = sld [smem:[#allocation4 + %s329]]
        %s331 = sadd.s32 %s323, 4
        %s332 = sld [smem:[#allocation4 + %s331]]
        %s333 = sadd.s32 %s323, 5
        %s334 = sld [smem:[#allocation4 + %s333]]
        %s335 = sadd.s32 %s323, 6
        %s336 = sld [smem:[#allocation4 + %s335]]
        %s337 = sadd.s32 %s323, 7
        %s338 = sld [smem:[#allocation4 + %s337]]
        %s339 = sadd.s32 %s323, 8
        %s340 = sld [smem:[#allocation4 + %s339]]
        %s341 = sadd.s32 %s323, 9
        %s342 = sld [smem:[#allocation4 + %s341]]
        %s343 = sadd.s32 %s323, 10
        %s344 = sld [smem:[#allocation4 + %s343]]
        %s345 = sadd.s32 %s323, 11
        %s346 = sld [smem:[#allocation4 + %s345]]
        %s347 = sadd.s32 %s323, 12
        %s348 = sld [smem:[#allocation4 + %s347]]
        %s349 = sadd.s32 %s323, 13
        %s350 = sld [smem:[#allocation4 + %s349]]
        %s351 = ssub.f32 1.0, %s334
        %p352 = scmp.gt.f32.partialorder %s324, 0.5
        // Predicated region
        $region53: #{simclr_pretrain_post_transform.1} parent=35 // pred_check
          %p353 = pneg %p352
        $region54: #{simclr_pretrain_post_transform.1} parent=35 // pred_check_branch
          %355 = sbr.rel (%p353) target = $region56
        $region55: #{simclr_pretrain_post_transform.1} parent=35 // pred_region
          loop: start=0, step=1, limit=4
          $region57: #{simclr_pretrain_post_transform.1} parent=55 // loop_pre_header
            _
          $region58: #{simclr_pretrain_post_transform.1} parent=55 // loop_header
            %s357 = sphi 0, %s361
            %p358 = scmp.ge.s32.totalorder %s357, 4
            %s362 = sphi 0.0, %s398
          $region59: #{simclr_pretrain_post_transform.1} parent=55 // loop_header_branch
            %360 = sbr.rel (%p358) target = $region63
          $region60: #{simclr_pretrain_post_transform.1} parent=55 // loop_body
            %s363 = smul.u32 %s357, 8
            %s364 = scalar_lea.vmem %s266, %s363 [#allocation8]
            %v365 = vld [vmem:[%s364] sm:$0xff]
            %v366 = vstv %s326
            %v367 = vmul.f32 %v365, %v366
            %v368 = vmax.f32 %v367, 0.0
            %v369 = vmin.f32 %v368, 1.0
            %s370 = sadd.s32 %s363, 32
            %s371 = scalar_lea.vmem %s266, %s370 [#allocation8]
            %v372 = vld [vmem:[%s371] sm:$0xff]
            %v373 = vmul.f32 %v372, %v366
            %v374 = vmax.f32 %v373, 0.0
            %v375 = vmin.f32 %v374, 1.0
            %s376 = sadd.s32 %s363, 64
            %s377 = scalar_lea.vmem %s266, %s376 [#allocation8]
            %v378 = vld [vmem:[%s377] sm:$0xff]
            %v379 = vmul.f32 %v378, %v366
            %v380 = vmax.f32 %v379, 0.0
            %v381 = vmin.f32 %v380, 1.0
            %v382 = vmul.f32 %v369, 0.299
            %v383 = vmul.f32 %v375, 0.587
            %v384 = vadd.f32 %v382, %v383
            %v385 = vmul.f32 %v381, 0.114
            %v386 = vadd.f32 %v384, %v385
            %vm387 = vcmask 261120
            %v388 = vsel %vm387, %v386, 0.0
            %389 = vadd.xlane.f32.xlu0 %v388
            %v390 = vpop.xlane.xlu0 %389
            %v391 = vrot.slane %v390, 4
            %v392 = vadd.f32 %v390, %v391
            %v393 = vrot.slane %v392, 2
            %v394 = vadd.f32 %v392, %v393
            %v395 = vrot.slane %v394, 1
            %v396 = vadd.f32 %v394, %v395
            %s397 = vtos %v396
            %s398 = sadd.f32 %s362, %s397
          $region61: #{simclr_pretrain_post_transform.1} parent=55 // loop_footer
            %s361 = sadd.s32 1, %s357
          $region62: #{simclr_pretrain_post_transform.1} parent=55 // loop_footer_branch
            %356 = sbr.rel target = $region58
          $region63: #{simclr_pretrain_post_transform.1} parent=55 // loop_exit
            _
          %s399 = smul.f32 %s362, 0.0009765625
          %s400 = ssub.f32 1.0, %s328
          %s401 = smul.f32 %s399, %s400
          %s402 = ssub.f32 1.0, %s330
          loop: start=0, step=1, limit=4
          $region64: #{simclr_pretrain_post_transform.1} parent=55 // loop_pre_header
            _
          $region65: #{simclr_pretrain_post_transform.1} parent=55 // loop_header
            %s404 = sphi 0, %s408
            %p405 = scmp.ge.s32.totalorder %s404, 4
          $region66: #{simclr_pretrain_post_transform.1} parent=55 // loop_header_branch
            %407 = sbr.rel (%p405) target = $region70
          $region67: #{simclr_pretrain_post_transform.1} parent=55 // loop_body
            %s409 = smul.u32 %s404, 8
            %s410 = scalar_lea.vmem %s266, %s409 [#allocation8]
            %v411 = vld [vmem:[%s410] sm:$0xff]
            %s412 = sadd.s32 %s409, 32
            %s413 = scalar_lea.vmem %s266, %s412 [#allocation8]
            %v414 = vld [vmem:[%s413] sm:$0xff]
            %s415 = sadd.s32 %s409, 64
            %s416 = scalar_lea.vmem %s266, %s415 [#allocation8]
            %v417 = vld [vmem:[%s416] sm:$0xff]
            %v418 = vstv %s326
            %v419 = vmul.f32 %v411, %v418
            %v420 = vmax.f32 %v419, 0.0
            %v421 = vmin.f32 %v420, 1.0
            %v422 = vmul.f32 %v414, %v418
            %v423 = vmax.f32 %v422, 0.0
            %v424 = vmin.f32 %v423, 1.0
            %v425 = vmul.f32 %v417, %v418
            %v426 = vmax.f32 %v425, 0.0
            %v427 = vmin.f32 %v426, 1.0
            %v428 = vstv %s328
            %v429 = vmul.f32 %v421, %v428
            %v430 = vstv %s401
            %v431 = vadd.f32 %v429, %v430
            %v432 = vmax.f32 %v431, 0.0
            %v433 = vmin.f32 %v432, 1.0
            %v434 = vmul.f32 %v424, %v428
            %v435 = vadd.f32 %v434, %v430
            %v436 = vmax.f32 %v435, 0.0
            %v437 = vmin.f32 %v436, 1.0
            %v438 = vmul.f32 %v427, %v428
            %v439 = vadd.f32 %v438, %v430
            %v440 = vmax.f32 %v439, 0.0
            %v441 = vmin.f32 %v440, 1.0
            %v442 = vmul.f32 %v433, 0.299
            %v443 = vmul.f32 %v437, 0.587
            %v444 = vadd.f32 %v442, %v443
            %v445 = vmul.f32 %v441, 0.114
            %v446 = vadd.f32 %v444, %v445
            %v447 = vstv %s402
            %v448 = vmul.f32 %v446, %v447
            %v449 = vstv %s330
            %v450 = vmul.f32 %v433, %v449
            %v451 = vadd.f32 %v450, %v448
            %v452 = vmax.f32 %v451, 0.0
            %v453 = vmin.f32 %v452, 1.0
            %v454 = vmul.f32 %v437, %v449
            %v455 = vadd.f32 %v454, %v448
            %v456 = vmax.f32 %v455, 0.0
            %v457 = vmin.f32 %v456, 1.0
            %v458 = vmul.f32 %v441, %v449
            %v459 = vadd.f32 %v458, %v448
            %v460 = vmax.f32 %v459, 0.0
            %v461 = vmin.f32 %v460, 1.0
            %v462 = vmax.f32 %v453, %v457
            %v463 = vmax.f32 %v462, %v461
            %v464 = vmin.f32 %v453, %v457
            %v465 = vmin.f32 %v464, %v461
            %v466 = vsub.f32 %v463, %v465
            %v467 = vmax.f32 %v463, 1e-08
            %v468 = vrcp.pop %v467
            %v469 = vmul.f32 %v466, %v468
            %vm470 = vcmp.gt.f32.partialorder %v466, 1e-08
            %v471 = vsel %vm470, %v466, 1.0
            %v472 = vrcp.pop %v471
            %v473 = vsub.f32 %v463, %v453
            %v474 = vmul.f32 %v473, %v472
            %v475 = vsub.f32 %v463, %v457
            %v476 = vmul.f32 %v475, %v472
            %v477 = vsub.f32 %v463, %v461
            %v478 = vmul.f32 %v477, %v472
            %vm479 = vcmp.eq.f32.partialorder %v463, %v453
            %v480 = vsub.f32 %v478, %v476
            %vm481 = vcmp.eq.f32.partialorder %v463, %v457
            %v482 = vadd.f32 %v474, 2.0
            %v483 = vsub.f32 %v482, %v478
            %v484 = vadd.f32 %v476, 4.0
            %v485 = vsub.f32 %v484, %v474
            %v486 = vsel %vm481, %v483, %v485
            %v487 = vsel %vm479, %v480, %v486
            %v488 = vmul.f32 %v487, 0.16666667
            %v489 = vsel %vm470, %v488, 0.0
            %v490 = vstv %s332
            %v491 = vadd.f32 %v489, %v490
            %v492 = vand.u32 2147483647, %v491
            %v493 = vrcp.pop 1.0
            %v494 = vmul.f32 %v492, %v493
            %v495 = vfloor.f32 %v494
            %v496 = vsub.f32 %v492, %v495
            %vm497 = vcmp.eq.f32.partialorder %v496, 1.0
            %v498 = vsel %vm497, 0.0, %v496
            %v499 = vand.u32 2147483647, %v498
            %v500 = vand.u32 %v491, 2147483648
            %v501 = vor.u32 %v499, %v500
            %vm502 = vcmp.ne.f32.partialorder %v501, 0.0
            %vm503 = vcmp.lt.f32.partialorder %v501, 0.0
            %vm504 = vmand %vm503, %vm502
            %v505 = vadd.f32 %v501, 1.0
            %v506 = vsel %vm504, %v505, %v501
            %v507 = vmul.f32 %v506, 6.0
            %v508 = vsub.f32 %v507, 3.0
            %v509 = vand.u32 2147483647, %v508
            %v510 = vsub.f32 %v509, 1.0
            %v511 = vmax.f32 %v510, 0.0
            %v512 = vmin.f32 %v511, 1.0
            %v513 = vsub.f32 %v507, 2.0
            %v514 = vand.u32 2147483647, %v513
            %v515 = vsub.f32 2.0, %v514
            %v516 = vmax.f32 %v515, 0.0
            %v517 = vmin.f32 %v516, 1.0
            %v518 = vsub.f32 %v507, 4.0
            %v519 = vand.u32 2147483647, %v518
            %v520 = vsub.f32 2.0, %v519
            %v521 = vmax.f32 %v520, 0.0
            %v522 = vmin.f32 %v521, 1.0
            %v523 = vsub.f32 %v512, 1.0
            %v524 = vmul.f32 %v523, %v469
            %v525 = vadd.f32 %v524, 1.0
            %v526 = vmul.f32 %v525, %v463
            %v527 = vsub.f32 %v517, 1.0
            %v528 = vmul.f32 %v527, %v469
            %v529 = vadd.f32 %v528, 1.0
            %v530 = vmul.f32 %v529, %v463
            %v531 = vsub.f32 %v522, 1.0
            %v532 = vmul.f32 %v531, %v469
            %v533 = vadd.f32 %v532, 1.0
            %v534 = vmul.f32 %v533, %v463
            %v535 = vmul.f32 %v526, 0.299
            %v536 = vmul.f32 %v530, 0.587
            %v537 = vadd.f32 %v535, %v536
            %v538 = vmul.f32 %v534, 0.114
            %v539 = vadd.f32 %v537, %v538
            %v540 = vstv %s334
            %v541 = vmul.f32 %v539, %v540
            %v542 = vstv %s351
            %v543 = vmul.f32 %v542, %v526
            %v544 = vadd.f32 %v543, %v541
            %v545 = vstv %s340
            %v546 = vmul.f32 %v544, %v545
            %v547 = vstv %s346
            %v548 = vadd.f32 %v546, %v547
            %s549 = scalar_lea.vmem %s319, %s409 [#allocation12]
            %vm550 = vcmask 261120
            %551 = vst.msk [vmem:[%s549] sm:$0xff] %vm550, %v548
            %v552 = vmul.f32 %v542, %v530
            %v553 = vadd.f32 %v552, %v541
            %v554 = vstv %s342
            %v555 = vmul.f32 %v553, %v554
            %v556 = vstv %s348
            %v557 = vadd.f32 %v555, %v556
            %s558 = scalar_lea.vmem %s319, %s412 [#allocation12]
            %559 = vst.msk [vmem:[%s558] sm:$0xff] %vm550, %v557
            %v560 = vmul.f32 %v542, %v534
            %v561 = vadd.f32 %v560, %v541
            %v562 = vstv %s344
            %v563 = vmul.f32 %v561, %v562
            %v564 = vstv %s350
            %v565 = vadd.f32 %v563, %v564
            %s566 = scalar_lea.vmem %s319, %s415 [#allocation12]
            %567 = vst.msk [vmem:[%s566] sm:$0xff] %vm550, %v565
          $region68: #{simclr_pretrain_post_transform.1} parent=55 // loop_footer
            %s408 = sadd.s32 1, %s404
          $region69: #{simclr_pretrain_post_transform.1} parent=55 // loop_footer_branch
            %403 = sbr.rel target = $region65
          $region70: #{simclr_pretrain_post_transform.1} parent=55 // loop_exit
            _
        $region56: #{simclr_pretrain_post_transform.1} parent=35 // pred_fallthru
          _
        %p568 = scmp.le.f32.partialorder %s324, 0.5
        // Predicated region
        $region71: #{simclr_pretrain_post_transform.1} parent=35 // pred_check
          %p569 = pneg %p568
        $region72: #{simclr_pretrain_post_transform.1} parent=35 // pred_check_branch
          %571 = sbr.rel (%p569) target = $region74
        $region73: #{simclr_pretrain_post_transform.1} parent=35 // pred_region
          %v572 = vld [vmem:[%s266] sm:$0xff]
          %v573 = vld [vmem:[%s266 + $0x8] sm:$0xff]
          %v574 = vld [vmem:[%s266 + $0x10] sm:$0xff]
          %v575 = vld [vmem:[%s266 + $0x18] sm:$0xff]
          %v576 = vld [vmem:[%s266 + $0x20] sm:$0xff]
          %v577 = vld [vmem:[%s266 + $0x28] sm:$0xff]
          %v578 = vld [vmem:[%s266 + $0x30] sm:$0xff]
          %v579 = vld [vmem:[%s266 + $0x38] sm:$0xff]
          %v580 = vld [vmem:[%s266 + $0x40] sm:$0xff]
          %v581 = vld [vmem:[%s266 + $0x48] sm:$0xff]
          %v582 = vld [vmem:[%s266 + $0x50] sm:$0xff]
          %v583 = vld [vmem:[%s266 + $0x58] sm:$0xff]
          %v584 = vmul.f32 %v572, 0.299
          %v585 = vmul.f32 %v573, 0.299
          %v586 = vmul.f32 %v574, 0.299
          %v587 = vmul.f32 %v575, 0.299
          %v588 = vmul.f32 %v576, 0.587
          %v589 = vmul.f32 %v577, 0.587
          %v590 = vmul.f32 %v578, 0.587
          %v591 = vmul.f32 %v579, 0.587
          %v592 = vadd.f32 %v584, %v588
          %v593 = vadd.f32 %v585, %v589
          %v594 = vadd.f32 %v586, %v590
          %v595 = vadd.f32 %v587, %v591
          %v596 = vmul.f32 %v580, 0.114
          %v597 = vmul.f32 %v581, 0.114
          %v598 = vmul.f32 %v582, 0.114
          %v599 = vmul.f32 %v583, 0.114
          %v600 = vadd.f32 %v592, %v596
          %v601 = vadd.f32 %v593, %v597
          %v602 = vadd.f32 %v594, %v598
          %v603 = vadd.f32 %v595, %v599
          %v604 = vstv %s334
          %v605 = vmul.f32 %v600, %v604
          %v606 = vmul.f32 %v601, %v604
          %v607 = vmul.f32 %v602, %v604
          %v608 = vmul.f32 %v603, %v604
          %v609 = vstv %s351
          %v610 = vmul.f32 %v609, %v572
          %v611 = vmul.f32 %v609, %v573
          %v612 = vmul.f32 %v609, %v574
          %v613 = vmul.f32 %v609, %v575
          %v614 = vadd.f32 %v610, %v605
          %v615 = vadd.f32 %v611, %v606
          %v616 = vadd.f32 %v612, %v607
          %v617 = vadd.f32 %v613, %v608
          %v618 = vstv %s340
          %v619 = vmul.f32 %v614, %v618
          %v620 = vmul.f32 %v615, %v618
          %v621 = vmul.f32 %v616, %v618
          %v622 = vmul.f32 %v617, %v618
          %v623 = vstv %s346
          %v624 = vadd.f32 %v619, %v623
          %v625 = vadd.f32 %v620, %v623
          %v626 = vadd.f32 %v621, %v623
          %v627 = vadd.f32 %v622, %v623
          %vm628 = vcmask 261120
          %629 = vst.msk [vmem:[%s319] sm:$0xff] %vm628, %v624
          %630 = vst.msk [vmem:[%s319 + $0x8] sm:$0xff] %vm628, %v625
          %631 = vst.msk [vmem:[%s319 + $0x10] sm:$0xff] %vm628, %v626
          %632 = vst.msk [vmem:[%s319 + $0x18] sm:$0xff] %vm628, %v627
          %v633 = vmul.f32 %v609, %v576
          %v634 = vmul.f32 %v609, %v577
          %v635 = vmul.f32 %v609, %v578
          %v636 = vmul.f32 %v609, %v579
          %v637 = vadd.f32 %v633, %v605
          %v638 = vadd.f32 %v634, %v606
          %v639 = vadd.f32 %v635, %v607
          %v640 = vadd.f32 %v636, %v608
          %v641 = vstv %s342
          %v642 = vmul.f32 %v637, %v641
          %v643 = vmul.f32 %v638, %v641
          %v644 = vmul.f32 %v639, %v641
          %v645 = vmul.f32 %v640, %v641
          %v646 = vstv %s348
          %v647 = vadd.f32 %v642, %v646
          %v648 = vadd.f32 %v643, %v646
          %v649 = vadd.f32 %v644, %v646
          %v650 = vadd.f32 %v645, %v646
          %651 = vst.msk [vmem:[%s319 + $0x20] sm:$0xff] %vm628, %v647
          %652 = vst.msk [vmem:[%s319 + $0x28] sm:$0xff] %vm628, %v648
          %653 = vst.msk [vmem:[%s319 + $0x30] sm:$0xff] %vm628, %v649
          %654 = vst.msk [vmem:[%s319 + $0x38] sm:$0xff] %vm628, %v650
          %v655 = vmul.f32 %v609, %v580
          %v656 = vmul.f32 %v609, %v581
          %v657 = vmul.f32 %v609, %v582
          %v658 = vmul.f32 %v609, %v583
          %v659 = vadd.f32 %v655, %v605
          %v660 = vadd.f32 %v656, %v606
          %v661 = vadd.f32 %v657, %v607
          %v662 = vadd.f32 %v658, %v608
          %v663 = vstv %s344
          %v664 = vmul.f32 %v659, %v663
          %v665 = vmul.f32 %v660, %v663
          %v666 = vmul.f32 %v661, %v663
          %v667 = vmul.f32 %v662, %v663
          %v668 = vstv %s350
          %v669 = vadd.f32 %v664, %v668
          %v670 = vadd.f32 %v665, %v668
          %v671 = vadd.f32 %v666, %v668
          %v672 = vadd.f32 %v667, %v668
          %673 = vst.msk [vmem:[%s319 + $0x40] sm:$0xff] %vm628, %v669
          %674 = vst.msk [vmem:[%s319 + $0x48] sm:$0xff] %vm628, %v670
          %675 = vst.msk [vmem:[%s319 + $0x50] sm:$0xff] %vm628, %v671
          %676 = vst.msk [vmem:[%s319 + $0x58] sm:$0xff] %vm628, %v672
        $region74: #{simclr_pretrain_post_transform.1} parent=35 // pred_fallthru
          _
        %p677 = scmp.gt.f32.partialorder %s338, 0.5
        // Predicated region
        $region75: #{simclr_pretrain_post_transform.1} parent=35 // pred_check
          %p678 = pneg %p677
        $region76: #{simclr_pretrain_post_transform.1} parent=35 // pred_check_branch
          %680 = sbr.rel (%p678) target = $region78
        $region77: #{simclr_pretrain_post_transform.1} parent=35 // pred_region
          %v681 = vld [vmem:[%s319] sm:$0xff]
          %v682 = vld [vmem:[%s319 + $0x8] sm:$0xff]
          %v683 = vld [vmem:[%s319 + $0x10] sm:$0xff]
          %v684 = vld [vmem:[%s319 + $0x18] sm:$0xff]
          %v685 = vld [vmem:[%s319 + $0x20] sm:$0xff]
          %v686 = vld [vmem:[%s319 + $0x28] sm:$0xff]
          %v687 = vld [vmem:[%s319 + $0x30] sm:$0xff]
          %v688 = vld [vmem:[%s319 + $0x38] sm:$0xff]
          %v689 = vld [vmem:[%s319 + $0x40] sm:$0xff]
          %v690 = vld [vmem:[%s319 + $0x48] sm:$0xff]
          %v691 = vld [vmem:[%s319 + $0x50] sm:$0xff]
          %v692 = vld [vmem:[%s319 + $0x58] sm:$0xff]
          %v693 = vpack.c.bf16 %v682, %v681
          %v694 = vpack.c.bf16 %v684, %v683
          %v695 = vpack.c.bf16 %v686, %v685
          %v696 = vpack.c.bf16 %v688, %v687
          %v697 = vpack.c.bf16 %v690, %v689
          %v698 = vpack.c.bf16 %v692, %v691
          %v699 = vld [vmem:[%s275] sm:$0xf]
          %v700 = vld [vmem:[%s275 + $0x4] sm:$0xf]
          %v701 = vld [vmem:[%s275 + $0x8] sm:$0xf]
          %v702 = vld [vmem:[%s275 + $0xc] sm:$0xf]
          %v707 = vunpack.c.l.b16 %v699
          %v708 = vunpack.c.l.b16 %v700
          %v709 = vunpack.c.l.b16 %v701
          %v710 = vunpack.c.l.b16 %v702
          %v711 = vpack.c.b16 %v708, %v707
          %v712 = vpack.c.b16 %v710, %v709
          %vm715 = vcmask 261120
          %v717 = vsel %vm715, %v693, 0
          %v720 = vsel %vm715, %v694, 0
          %v723 = vsel %vm715, %v695, 0
          %v726 = vsel %vm715, %v696, 0
          %v729 = vsel %vm715, %v697, 0
          %v732 = vsel %vm715, %v698, 0
          %734 = vmatprep.subr.bf16.mxu0 0
          %735 = vmatpush1.bf16.msra.mxu0 0
          %736 = vmatprep.subr.bf16.mxu0 0
          %737 = vmatpush1.bf16.msra.mxu0 0
          %738 = vmatprep.subr.bf16.mxu0 0
          %739 = vmatpush1.bf16.msra.mxu0 0
          %740 = vmatprep.subr.bf16.mxu0 0
          %741 = vmatpush1.bf16.msra.mxu0 0
          %742 = vmatprep.subr.bf16.mxu0 0
          %743 = vmatpush1.bf16.msra.mxu0 0
          %744 = vmatprep.subr.bf16.mxu0 0
          %745 = vmatpush1.bf16.msra.mxu0 0
          %746 = vmatprep.subr.bf16.mxu0 0
          %747 = vmatpush1.bf16.msra.mxu0 %v712
          %748 = vmatprep.subr.bf16.mxu0 0
          %749 = vmatpush1.bf16.msra.mxu0 %v711
          %750 = vmatprep.subr.bf16.mxu0 0
          %751 = vmatpush2.bf16.msra.mxu0 0
          %752 = vmatprep.subr.bf16.mxu0 0
          %753 = vmatpush2.bf16.msra.mxu0 0
          %754 = vmatprep.subr.bf16.mxu0 0
          %755 = vmatpush2.bf16.msra.mxu0 0
          %756 = vmatprep.subr.bf16.mxu0 0
          %757 = vmatpush2.bf16.msra.mxu0 0
          %758 = vmatprep.subr.bf16.mxu0 0
          %759 = vmatpush2.bf16.msra.mxu0 0
          %760 = vmatprep.subr.bf16.mxu0 0
          %761 = vmatpush2.bf16.msra.mxu0 0
          %762 = vmatprep.subr.bf16.mxu0 0
          %763 = vmatpush2.bf16.msra.mxu0 0
          %764 = vmatprep.subr.bf16.mxu0 0
          %765 = vmatpush2.bf16.msra.mxu0 0
          %766 = vmatprep.mubr.bf16.mxu0 0
          %767 = vmatmul.mubr.bf16.gmra.mxu0 %v717
          %v768 = vpop.f32.mrf.mxu0
          %v769 = vadd.f32 0.0, %v768
          %v770 = vpop.f32.mrf.mxu0
          %v771 = vpop.f32.mrf.mxu0
          %v772 = vadd.f32 0.0, %v771
          %v773 = vpop.f32.mrf.mxu0
          %774 = vmatprep.mubr.bf16.mxu0 0
          %775 = vmatmul.mubr.bf16.gmra.mxu0 %v720
          %v776 = vpop.f32.mrf.mxu0
          %v777 = vadd.f32 0.0, %v776
          %v778 = vpop.f32.mrf.mxu0
          %v779 = vpop.f32.mrf.mxu0
          %v780 = vadd.f32 0.0, %v779
          %v781 = vpop.f32.mrf.mxu0
          %782 = vmatprep.mubr.bf16.mxu0 0
          %783 = vmatmul.mubr.bf16.gmra.mxu0 %v723
          %v784 = vpop.f32.mrf.mxu0
          %v785 = vadd.f32 0.0, %v784
          %v786 = vpop.f32.mrf.mxu0
          %v787 = vpop.f32.mrf.mxu0
          %v788 = vadd.f32 0.0, %v787
          %v789 = vpop.f32.mrf.mxu0
          %790 = vmatprep.mubr.bf16.mxu0 0
          %791 = vmatmul.mubr.bf16.gmra.mxu0 %v726
          %v792 = vpop.f32.mrf.mxu0
          %v793 = vadd.f32 0.0, %v792
          %v794 = vpop.f32.mrf.mxu0
          %v795 = vpop.f32.mrf.mxu0
          %v796 = vadd.f32 0.0, %v795
          %v797 = vpop.f32.mrf.mxu0
          %798 = vmatprep.mubr.bf16.mxu0 0
          %799 = vmatmul.mubr.bf16.gmra.mxu0 %v729
          %v800 = vpop.f32.mrf.mxu0
          %v801 = vadd.f32 0.0, %v800
          %v802 = vpop.f32.mrf.mxu0
          %v803 = vpop.f32.mrf.mxu0
          %v804 = vadd.f32 0.0, %v803
          %v805 = vpop.f32.mrf.mxu0
          %806 = vmatprep.mubr.bf16.mxu0 0
          %807 = vmatmul.mubr.bf16.gmra.mxu0 %v732
          %v808 = vpop.f32.mrf.mxu0
          %v809 = vadd.f32 0.0, %v808
          %v810 = vpop.f32.mrf.mxu0
          %v811 = vpop.f32.mrf.mxu0
          %v812 = vadd.f32 0.0, %v811
          %v813 = vpop.f32.mrf.mxu0
          %814 = vdwg.mxu0
          %v815 = vld [vmem:[%s284] sm:$0xf]
          %v816 = vld [vmem:[%s284 + $0x4] sm:$0xf]
          %v817 = vld [vmem:[%s284 + $0x8] sm:$0xf]
          %v818 = vld [vmem:[%s284 + $0xc] sm:$0xf]
          %v819 = vpack.c.bf16 %v772, %v769
          %v820 = vpack.c.bf16 %v780, %v777
          %v825 = vunpack.c.l.b16 %v815
          %v826 = vunpack.c.l.b16 %v816
          %v827 = vunpack.c.l.b16 %v817
          %v828 = vunpack.c.l.b16 %v818
          %v829 = vpack.c.b16 %v826, %v825
          %v830 = vpack.c.b16 %v828, %v827
          %v832 = vsel %vm715, %v829, 0
          %v835 = vsel %vm715, %v830, 0
          %837 = vmatprep.subr.bf16.mxu0 0
          %838 = vmatpush1.bf16.msra.mxu0 0
          %839 = vmatprep.subr.bf16.mxu0 0
          %840 = vmatpush1.bf16.msra.mxu0 0
          %841 = vmatprep.subr.bf16.mxu0 0
          %842 = vmatpush1.bf16.msra.mxu0 0
          %843 = vmatprep.subr.bf16.mxu0 0
          %844 = vmatpush1.bf16.msra.mxu0 0
          %845 = vmatprep.subr.bf16.mxu0 0
          %846 = vmatpush1.bf16.msra.mxu0 0
          %847 = vmatprep.subr.bf16.mxu0 0
          %848 = vmatpush1.bf16.msra.mxu0 0
          %849 = vmatprep.subr.bf16.mxu0 0
          %850 = vmatpush1.bf16.msra.mxu0 %v820
          %851 = vmatprep.subr.bf16.mxu0 0
          %852 = vmatpush1.bf16.msra.mxu0 %v819
          %853 = vmatprep.subr.bf16.mxu0 0
          %854 = vmatpush2.bf16.msra.mxu0 0
          %855 = vmatprep.subr.bf16.mxu0 0
          %856 = vmatpush2.bf16.msra.mxu0 0
          %857 = vmatprep.subr.bf16.mxu0 0
          %858 = vmatpush2.bf16.msra.mxu0 0
          %859 = vmatprep.subr.bf16.mxu0 0
          %860 = vmatpush2.bf16.msra.mxu0 0
          %861 = vmatprep.subr.bf16.mxu0 0
          %862 = vmatpush2.bf16.msra.mxu0 0
          %863 = vmatprep.subr.bf16.mxu0 0
          %864 = vmatpush2.bf16.msra.mxu0 0
          %865 = vmatprep.subr.bf16.mxu0 0
          %866 = vmatpush2.bf16.msra.mxu0 0
          %867 = vmatprep.subr.bf16.mxu0 0
          %868 = vmatpush2.bf16.msra.mxu0 0
          %869 = vmatprep.mubr.bf16.mxu0 0
          %870 = vmatmul.mubr.bf16.gmra.mxu0 %v832
          %v871 = vpop.f32.mrf.mxu0
          %v872 = vadd.f32 0.0, %v871
          %v873 = vpop.f32.mrf.mxu0
          %v874 = vpop.f32.mrf.mxu0
          %v875 = vadd.f32 0.0, %v874
          %v876 = vpop.f32.mrf.mxu0
          %877 = vmatprep.mubr.bf16.mxu0 0
          %878 = vmatmul.mubr.bf16.gmra.mxu0 %v835
          %v879 = vpop.f32.mrf.mxu0
          %v880 = vadd.f32 0.0, %v879
          %v881 = vpop.f32.mrf.mxu0
          %v882 = vpop.f32.mrf.mxu0
          %v883 = vadd.f32 0.0, %v882
          %v884 = vpop.f32.mrf.mxu0
          %885 = vdwg.mxu0
          %886 = vst.msk [vmem:[%s319] sm:$0xff] %vm715, %v872
          %887 = vst.msk [vmem:[%s319 + $0x8] sm:$0xff] %vm715, %v875
          %888 = vst.msk [vmem:[%s319 + $0x10] sm:$0xff] %vm715, %v880
          %889 = vst.msk [vmem:[%s319 + $0x18] sm:$0xff] %vm715, %v883
          %v890 = vpack.c.bf16 %v788, %v785
          %v891 = vpack.c.bf16 %v796, %v793
          %892 = vmatprep.subr.bf16.mxu0 0
          %893 = vmatpush1.bf16.msra.mxu0 0
          %894 = vmatprep.subr.bf16.mxu0 0
          %895 = vmatpush1.bf16.msra.mxu0 0
          %896 = vmatprep.subr.bf16.mxu0 0
          %897 = vmatpush1.bf16.msra.mxu0 0
          %898 = vmatprep.subr.bf16.mxu0 0
          %899 = vmatpush1.bf16.msra.mxu0 0
          %900 = vmatprep.subr.bf16.mxu0 0
          %901 = vmatpush1.bf16.msra.mxu0 0
          %902 = vmatprep.subr.bf16.mxu0 0
          %903 = vmatpush1.bf16.msra.mxu0 0
          %904 = vmatprep.subr.bf16.mxu0 0
          %905 = vmatpush1.bf16.msra.mxu0 %v891
          %906 = vmatprep.subr.bf16.mxu0 0
          %907 = vmatpush1.bf16.msra.mxu0 %v890
          %908 = vmatprep.subr.bf16.mxu0 0
          %909 = vmatpush2.bf16.msra.mxu0 0
          %910 = vmatprep.subr.bf16.mxu0 0
          %911 = vmatpush2.bf16.msra.mxu0 0
          %912 = vmatprep.subr.bf16.mxu0 0
          %913 = vmatpush2.bf16.msra.mxu0 0
          %914 = vmatprep.subr.bf16.mxu0 0
          %915 = vmatpush2.bf16.msra.mxu0 0
          %916 = vmatprep.subr.bf16.mxu0 0
          %917 = vmatpush2.bf16.msra.mxu0 0
          %918 = vmatprep.subr.bf16.mxu0 0
          %919 = vmatpush2.bf16.msra.mxu0 0
          %920 = vmatprep.subr.bf16.mxu0 0
          %921 = vmatpush2.bf16.msra.mxu0 0
          %922 = vmatprep.subr.bf16.mxu0 0
          %923 = vmatpush2.bf16.msra.mxu0 0
          %924 = vmatprep.mubr.bf16.mxu0 0
          %925 = vmatmul.mubr.bf16.gmra.mxu0 %v832
          %v926 = vpop.f32.mrf.mxu0
          %v927 = vadd.f32 0.0, %v926
          %v928 = vpop.f32.mrf.mxu0
          %v929 = vpop.f32.mrf.mxu0
          %v930 = vadd.f32 0.0, %v929
          %v931 = vpop.f32.mrf.mxu0
          %932 = vmatprep.mubr.bf16.mxu0 0
          %933 = vmatmul.mubr.bf16.gmra.mxu0 %v835
          %v934 = vpop.f32.mrf.mxu0
          %v935 = vadd.f32 0.0, %v934
          %v936 = vpop.f32.mrf.mxu0
          %v937 = vpop.f32.mrf.mxu0
          %v938 = vadd.f32 0.0, %v937
          %v939 = vpop.f32.mrf.mxu0
          %940 = vdwg.mxu0
          %941 = vst.msk [vmem:[%s319 + $0x20] sm:$0xff] %vm715, %v927
          %942 = vst.msk [vmem:[%s319 + $0x28] sm:$0xff] %vm715, %v930
          %943 = vst.msk [vmem:[%s319 + $0x30] sm:$0xff] %vm715, %v935
          %944 = vst.msk [vmem:[%s319 + $0x38] sm:$0xff] %vm715, %v938
          %v945 = vpack.c.bf16 %v804, %v801
          %v946 = vpack.c.bf16 %v812, %v809
          %947 = vmatprep.subr.bf16.mxu0 0
          %948 = vmatpush1.bf16.msra.mxu0 0
          %949 = vmatprep.subr.bf16.mxu0 0
          %950 = vmatpush1.bf16.msra.mxu0 0
          %951 = vmatprep.subr.bf16.mxu0 0
          %952 = vmatpush1.bf16.msra.mxu0 0
          %953 = vmatprep.subr.bf16.mxu0 0
          %954 = vmatpush1.bf16.msra.mxu0 0
          %955 = vmatprep.subr.bf16.mxu0 0
          %956 = vmatpush1.bf16.msra.mxu0 0
          %957 = vmatprep.subr.bf16.mxu0 0
          %958 = vmatpush1.bf16.msra.mxu0 0
          %959 = vmatprep.subr.bf16.mxu0 0
          %960 = vmatpush1.bf16.msra.mxu0 %v946
          %961 = vmatprep.subr.bf16.mxu0 0
          %962 = vmatpush1.bf16.msra.mxu0 %v945
          %963 = vmatprep.subr.bf16.mxu0 0
          %964 = vmatpush2.bf16.msra.mxu0 0
          %965 = vmatprep.subr.bf16.mxu0 0
          %966 = vmatpush2.bf16.msra.mxu0 0
          %967 = vmatprep.subr.bf16.mxu0 0
          %968 = vmatpush2.bf16.msra.mxu0 0
          %969 = vmatprep.subr.bf16.mxu0 0
          %970 = vmatpush2.bf16.msra.mxu0 0
          %971 = vmatprep.subr.bf16.mxu0 0
          %972 = vmatpush2.bf16.msra.mxu0 0
          %973 = vmatprep.subr.bf16.mxu0 0
          %974 = vmatpush2.bf16.msra.mxu0 0
          %975 = vmatprep.subr.bf16.mxu0 0
          %976 = vmatpush2.bf16.msra.mxu0 0
          %977 = vmatprep.subr.bf16.mxu0 0
          %978 = vmatpush2.bf16.msra.mxu0 0
          %979 = vmatprep.mubr.bf16.mxu0 0
          %980 = vmatmul.mubr.bf16.gmra.mxu0 %v832
          %v981 = vpop.f32.mrf.mxu0
          %v982 = vadd.f32 0.0, %v981
          %v983 = vpop.f32.mrf.mxu0
          %v984 = vpop.f32.mrf.mxu0
          %v985 = vadd.f32 0.0, %v984
          %v986 = vpop.f32.mrf.mxu0
          %987 = vmatprep.mubr.bf16.mxu0 0
          %988 = vmatmul.mubr.bf16.gmra.mxu0 %v835
          %v989 = vpop.f32.mrf.mxu0
          %v990 = vadd.f32 0.0, %v989
          %v991 = vpop.f32.mrf.mxu0
          %v992 = vpop.f32.mrf.mxu0
          %v993 = vadd.f32 0.0, %v992
          %v994 = vpop.f32.mrf.mxu0
          %995 = vdwg.mxu0
          %996 = vst.msk [vmem:[%s319 + $0x40] sm:$0xff] %vm715, %v982
          %997 = vst.msk [vmem:[%s319 + $0x48] sm:$0xff] %vm715, %v985
          %998 = vst.msk [vmem:[%s319 + $0x50] sm:$0xff] %vm715, %v990
          %999 = vst.msk [vmem:[%s319 + $0x58] sm:$0xff] %vm715, %v993
        $region78: #{simclr_pretrain_post_transform.1} parent=35 // pred_fallthru
          _
        %p1000 = scmp.gt.f32.partialorder %s336, 0.5
        %p1001 = scmp.le.f32.partialorder %s338, 0.5
        %p1002 = pnand %p1000, %p1001
        %p1003 = pneg %p1002
        // Predicated region
        $region79: #{simclr_pretrain_post_transform.1} parent=35 // pred_check
          _
        $region80: #{simclr_pretrain_post_transform.1} parent=35 // pred_check_branch
          %1005 = sbr.rel (%p1002) target = $region82
        $region81: #{simclr_pretrain_post_transform.1} parent=35 // pred_region
          %v1006 = vlaneseq
          %v1007 = vshrl.u32 %v1006, 7
          %v1008 = vadd.s32 %v1007, 8
          %v1009 = vadd.s32 %v1007, 16
          %v1010 = vadd.s32 %v1007, 24
          %v1011 = vlaneseq
          %v1012 = vand.u32 %v1011, 127
          %v1013 = vadd.s32 %v1007, %v1012
          %v1014 = vadd.s32 %v1008, %v1012
          %v1015 = vadd.s32 %v1009, %v1012
          %v1016 = vadd.s32 %v1010, %v1012
          %vm1017 = vcmp.eq.s32.totalorder %v1013, 31
          %vm1018 = vcmp.eq.s32.totalorder %v1014, 31
          %vm1019 = vcmp.eq.s32.totalorder %v1015, 31
          %vm1020 = vcmp.eq.s32.totalorder %v1016, 31
          %v1021 = vsel %vm1017, 1, 0
          %v1022 = vsel %vm1018, 1, 0
          %v1023 = vsel %vm1019, 1, 0
          %v1024 = vsel %vm1020, 1, 0
          %v1025 = vcvt.s32.f32 %v1021
          %v1026 = vcvt.s32.f32 %v1022
          %v1027 = vcvt.s32.f32 %v1023
          %v1028 = vcvt.s32.f32 %v1024
          %v1029 = vld [vmem:[%s319] sm:$0xff]
          %v1030 = vld [vmem:[%s319 + $0x8] sm:$0xff]
          %v1031 = vld [vmem:[%s319 + $0x10] sm:$0xff]
          %v1032 = vld [vmem:[%s319 + $0x18] sm:$0xff]
          %v1033 = vld [vmem:[%s319 + $0x20] sm:$0xff]
          %v1034 = vld [vmem:[%s319 + $0x28] sm:$0xff]
          %v1035 = vld [vmem:[%s319 + $0x30] sm:$0xff]
          %v1036 = vld [vmem:[%s319 + $0x38] sm:$0xff]
          %v1037 = vld [vmem:[%s319 + $0x40] sm:$0xff]
          %v1038 = vld [vmem:[%s319 + $0x48] sm:$0xff]
          %v1039 = vld [vmem:[%s319 + $0x50] sm:$0xff]
          %v1040 = vld [vmem:[%s319 + $0x58] sm:$0xff]
          %vm1041 = vcmask 261120
          %v1043 = vsel %vm1041, %v1029, 0
          %v1046 = vsel %vm1041, %v1030, 0
          %v1049 = vsel %vm1041, %v1031, 0
          %v1052 = vsel %vm1041, %v1032, 0
          %v1055 = vsel %vm1041, %v1033, 0
          %v1058 = vsel %vm1041, %v1034, 0
          %v1061 = vsel %vm1041, %v1035, 0
          %v1064 = vsel %vm1041, %v1036, 0
          %v1067 = vsel %vm1041, %v1037, 0
          %v1070 = vsel %vm1041, %v1038, 0
          %v1073 = vsel %vm1041, %v1039, 0
          %v1076 = vsel %vm1041, %v1040, 0
          %1078 = vmatprep.subr.mxu0 0.0
          %1079 = vmatpush1.msra.mxu0 0.0
          %1080 = vmatprep.subr.mxu0 0.0
          %1081 = vmatpush1.msra.mxu0 0.0
          %1082 = vmatprep.subr.mxu0 0.0
          %1083 = vmatpush1.msra.mxu0 0.0
          %1084 = vmatprep.subr.mxu0 0.0
          %1085 = vmatpush1.msra.mxu0 0.0
          %1086 = vmatprep.subr.mxu0 0.0
          %1087 = vmatpush1.msra.mxu0 0.0
          %1088 = vmatprep.subr.mxu0 0.0
          %1089 = vmatpush1.msra.mxu0 0.0
          %1090 = vmatprep.subr.mxu0 0.0
          %1091 = vmatpush1.msra.mxu0 0.0
          %1092 = vmatprep.subr.mxu0 0.0
          %1093 = vmatpush1.msra.mxu0 0.0
          %1094 = vmatprep.subr.mxu0 0.0
          %1095 = vmatpush1.msra.mxu0 0.0
          %1096 = vmatprep.subr.mxu0 0.0
          %1097 = vmatpush1.msra.mxu0 0.0
          %1098 = vmatprep.subr.mxu0 0.0
          %1099 = vmatpush1.msra.mxu0 0.0
          %1100 = vmatprep.subr.mxu0 0.0
          %1101 = vmatpush1.msra.mxu0 0.0
          %1102 = vmatprep.subr.mxu0 0.0
          %v1103 = vand.u32 %v1028, 4294901760
          %1104 = vmatpush1.msra.mxu0 %v1103
          %1105 = vmatprep.subr.mxu0 0.0
          %v1106 = vand.u32 %v1027, 4294901760
          %1107 = vmatpush1.msra.mxu0 %v1106
          %1108 = vmatprep.subr.mxu0 0.0
          %v1109 = vand.u32 %v1026, 4294901760
          %1110 = vmatpush1.msra.mxu0 %v1109
          %1111 = vmatprep.subr.mxu0 0.0
          %v1112 = vand.u32 %v1025, 4294901760
          %1113 = vmatpush1.msra.mxu0 %v1112
          %1114 = vmatprep.subr.mxu0 0.0
          %1115 = vmatpush2.msra.mxu0 0.0
          %1116 = vmatprep.subr.mxu0 0.0
          %1117 = vmatpush2.msra.mxu0 0.0
          %1118 = vmatprep.subr.mxu0 0.0
          %1119 = vmatpush2.msra.mxu0 0.0
          %1120 = vmatprep.subr.mxu0 0.0
          %1121 = vmatpush2.msra.mxu0 0.0
          %1122 = vmatprep.subr.mxu0 0.0
          %1123 = vmatpush2.msra.mxu0 0.0
          %1124 = vmatprep.subr.mxu0 0.0
          %1125 = vmatpush2.msra.mxu0 0.0
          %1126 = vmatprep.subr.mxu0 0.0
          %1127 = vmatpush2.msra.mxu0 0.0
          %1128 = vmatprep.subr.mxu0 0.0
          %1129 = vmatpush2.msra.mxu0 0.0
          %1130 = vmatprep.subr.mxu0 0.0
          %1131 = vmatpush2.msra.mxu0 0.0
          %1132 = vmatprep.subr.mxu0 0.0
          %1133 = vmatpush2.msra.mxu0 0.0
          %1134 = vmatprep.subr.mxu0 0.0
          %1135 = vmatpush2.msra.mxu0 0.0
          %1136 = vmatprep.subr.mxu0 0.0
          %1137 = vmatpush2.msra.mxu0 0.0
          %1138 = vmatprep.subr.mxu0 0.0
          %1139 = vmatpush2.msra.mxu0 0.0
          %1140 = vmatprep.subr.mxu0 0.0
          %1141 = vmatpush2.msra.mxu0 0.0
          %1142 = vmatprep.subr.mxu0 0.0
          %1143 = vmatpush2.msra.mxu0 0.0
          %1144 = vmatprep.subr.mxu0 0.0
          %1145 = vmatpush2.msra.mxu0 0.0
          %1146 = vmatprep.mubr.f32.mxu0 0.0
          %v1147 = vand.u32 %v1043, 4294901760
          %v1148 = vsub.f32 %v1043, %v1147
          %v1149 = vand.u32 %v1148, 4294901760
          %v1150 = vsub.f32 %v1148, %v1149
          %v1151 = vand.u32 %v1150, 4294901760
          %1152 = vmatmul.mubr.f32.gmra.mxu0 %v1151
          %v1153 = vpop.f32.mrf.mxu0
          %v1154 = vadd.f32 0.0, %v1153
          %v1155 = vpop.f32.mrf.mxu0
          %1156 = vmatprep.mubr.f32.mxu0 0.0
          %v1157 = vand.u32 %v1046, 4294901760
          %v1158 = vsub.f32 %v1046, %v1157
          %v1159 = vand.u32 %v1158, 4294901760
          %v1160 = vsub.f32 %v1158, %v1159
          %v1161 = vand.u32 %v1160, 4294901760
          %1162 = vmatmul.mubr.f32.gmra.mxu0 %v1161
          %v1163 = vpop.f32.mrf.mxu0
          %v1164 = vadd.f32 0.0, %v1163
          %v1165 = vpop.f32.mrf.mxu0
          %1166 = vmatprep.mubr.f32.mxu0 0.0
          %v1167 = vand.u32 %v1049, 4294901760
          %v1168 = vsub.f32 %v1049, %v1167
          %v1169 = vand.u32 %v1168, 4294901760
          %v1170 = vsub.f32 %v1168, %v1169
          %v1171 = vand.u32 %v1170, 4294901760
          %1172 = vmatmul.mubr.f32.gmra.mxu0 %v1171
          %v1173 = vpop.f32.mrf.mxu0
          %v1174 = vadd.f32 0.0, %v1173
          %v1175 = vpop.f32.mrf.mxu0
          %1176 = vmatprep.mubr.f32.mxu0 0.0
          %v1177 = vand.u32 %v1052, 4294901760
          %v1178 = vsub.f32 %v1052, %v1177
          %v1179 = vand.u32 %v1178, 4294901760
          %v1180 = vsub.f32 %v1178, %v1179
          %v1181 = vand.u32 %v1180, 4294901760
          %1182 = vmatmul.mubr.f32.gmra.mxu0 %v1181
          %v1183 = vpop.f32.mrf.mxu0
          %v1184 = vadd.f32 0.0, %v1183
          %v1185 = vpop.f32.mrf.mxu0
          %1186 = vmatprep.mubr.f32.mxu0 0.0
          %v1187 = vand.u32 %v1055, 4294901760
          %v1188 = vsub.f32 %v1055, %v1187
          %v1189 = vand.u32 %v1188, 4294901760
          %v1190 = vsub.f32 %v1188, %v1189
          %v1191 = vand.u32 %v1190, 4294901760
          %1192 = vmatmul.mubr.f32.gmra.mxu0 %v1191
          %v1193 = vpop.f32.mrf.mxu0
          %v1194 = vadd.f32 0.0, %v1193
          %v1195 = vpop.f32.mrf.mxu0
          %1196 = vmatprep.mubr.f32.mxu0 0.0
          %v1197 = vand.u32 %v1058, 4294901760
          %v1198 = vsub.f32 %v1058, %v1197
          %v1199 = vand.u32 %v1198, 4294901760
          %v1200 = vsub.f32 %v1198, %v1199
          %v1201 = vand.u32 %v1200, 4294901760
          %1202 = vmatmul.mubr.f32.gmra.mxu0 %v1201
          %v1203 = vpop.f32.mrf.mxu0
          %v1204 = vadd.f32 0.0, %v1203
          %v1205 = vpop.f32.mrf.mxu0
          %1206 = vmatprep.mubr.f32.mxu0 0.0
          %v1207 = vand.u32 %v1061, 4294901760
          %v1208 = vsub.f32 %v1061, %v1207
          %v1209 = vand.u32 %v1208, 4294901760
          %v1210 = vsub.f32 %v1208, %v1209
          %v1211 = vand.u32 %v1210, 4294901760
          %1212 = vmatmul.mubr.f32.gmra.mxu0 %v1211
          %v1213 = vpop.f32.mrf.mxu0
          %v1214 = vadd.f32 0.0, %v1213
          %v1215 = vpop.f32.mrf.mxu0
          %1216 = vmatprep.mubr.f32.mxu0 0.0
          %v1217 = vand.u32 %v1064, 4294901760
          %v1218 = vsub.f32 %v1064, %v1217
          %v1219 = vand.u32 %v1218, 4294901760
          %v1220 = vsub.f32 %v1218, %v1219
          %v1221 = vand.u32 %v1220, 4294901760
          %1222 = vmatmul.mubr.f32.gmra.mxu0 %v1221
          %v1223 = vpop.f32.mrf.mxu0
          %v1224 = vadd.f32 0.0, %v1223
          %v1225 = vpop.f32.mrf.mxu0
          %1226 = vmatprep.mubr.f32.mxu0 0.0
          %v1227 = vand.u32 %v1067, 4294901760
          %v1228 = vsub.f32 %v1067, %v1227
          %v1229 = vand.u32 %v1228, 4294901760
          %v1230 = vsub.f32 %v1228, %v1229
          %v1231 = vand.u32 %v1230, 4294901760
          %1232 = vmatmul.mubr.f32.gmra.mxu0 %v1231
          %v1233 = vpop.f32.mrf.mxu0
          %v1234 = vadd.f32 0.0, %v1233
          %v1235 = vpop.f32.mrf.mxu0
          %1236 = vmatprep.mubr.f32.mxu0 0.0
          %v1237 = vand.u32 %v1070, 4294901760
          %v1238 = vsub.f32 %v1070, %v1237
          %v1239 = vand.u32 %v1238, 4294901760
          %v1240 = vsub.f32 %v1238, %v1239
          %v1241 = vand.u32 %v1240, 4294901760
          %1242 = vmatmul.mubr.f32.gmra.mxu0 %v1241
          %v1243 = vpop.f32.mrf.mxu0
          %v1244 = vadd.f32 0.0, %v1243
          %v1245 = vpop.f32.mrf.mxu0
          %1246 = vmatprep.mubr.f32.mxu0 0.0
          %v1247 = vand.u32 %v1073, 4294901760
          %v1248 = vsub.f32 %v1073, %v1247
          %v1249 = vand.u32 %v1248, 4294901760
          %v1250 = vsub.f32 %v1248, %v1249
          %v1251 = vand.u32 %v1250, 4294901760
          %1252 = vmatmul.mubr.f32.gmra.mxu0 %v1251
          %v1253 = vpop.f32.mrf.mxu0
          %v1254 = vadd.f32 0.0, %v1253
          %v1255 = vpop.f32.mrf.mxu0
          %1256 = vmatprep.mubr.f32.mxu0 0.0
          %v1257 = vand.u32 %v1076, 4294901760
          %v1258 = vsub.f32 %v1076, %v1257
          %v1259 = vand.u32 %v1258, 4294901760
          %v1260 = vsub.f32 %v1258, %v1259
          %v1261 = vand.u32 %v1260, 4294901760
          %1262 = vmatmul.mubr.f32.gmra.mxu0 %v1261
          %v1263 = vpop.f32.mrf.mxu0
          %v1264 = vadd.f32 0.0, %v1263
          %v1265 = vpop.f32.mrf.mxu0
          %1266 = vdwg.mxu0
          %1267 = vmatprep.subr.mxu0 0.0
          %1268 = vmatpush1.msra.mxu0 0.0
          %1269 = vmatprep.subr.mxu0 0.0
          %1270 = vmatpush1.msra.mxu0 0.0
          %1271 = vmatprep.subr.mxu0 0.0
          %1272 = vmatpush1.msra.mxu0 0.0
          %1273 = vmatprep.subr.mxu0 0.0
          %1274 = vmatpush1.msra.mxu0 0.0
          %1275 = vmatprep.subr.mxu0 0.0
          %1276 = vmatpush1.msra.mxu0 0.0
          %1277 = vmatprep.subr.mxu0 0.0
          %1278 = vmatpush1.msra.mxu0 0.0
          %1279 = vmatprep.subr.mxu0 0.0
          %1280 = vmatpush1.msra.mxu0 0.0
          %1281 = vmatprep.subr.mxu0 0.0
          %1282 = vmatpush1.msra.mxu0 0.0
          %1283 = vmatprep.subr.mxu0 0.0
          %1284 = vmatpush1.msra.mxu0 0.0
          %1285 = vmatprep.subr.mxu0 0.0
          %1286 = vmatpush1.msra.mxu0 0.0
          %1287 = vmatprep.subr.mxu0 0.0
          %1288 = vmatpush1.msra.mxu0 0.0
          %1289 = vmatprep.subr.mxu0 0.0
          %1290 = vmatpush1.msra.mxu0 0.0
          %1291 = vmatprep.subr.mxu0 0.0
          %v1292 = vand.u32 %v1028, 4294901760
          %v1293 = vsub.f32 %v1028, %v1292
          %v1294 = vand.u32 %v1293, 4294901760
          %v1295 = vsub.f32 %v1293, %v1294
          %v1296 = vand.u32 %v1295, 4294901760
          %1297 = vmatpush1.msra.mxu0 %v1296
          %1298 = vmatprep.subr.mxu0 0.0
          %v1299 = vand.u32 %v1027, 4294901760
          %v1300 = vsub.f32 %v1027, %v1299
          %v1301 = vand.u32 %v1300, 4294901760
          %v1302 = vsub.f32 %v1300, %v1301
          %v1303 = vand.u32 %v1302, 4294901760
          %1304 = vmatpush1.msra.mxu0 %v1303
          %1305 = vmatprep.subr.mxu0 0.0
          %v1306 = vand.u32 %v1026, 4294901760
          %v1307 = vsub.f32 %v1026, %v1306
          %v1308 = vand.u32 %v1307, 4294901760
          %v1309 = vsub.f32 %v1307, %v1308
          %v1310 = vand.u32 %v1309, 4294901760
          %1311 = vmatpush1.msra.mxu0 %v1310
          %1312 = vmatprep.subr.mxu0 0.0
          %v1313 = vand.u32 %v1025, 4294901760
          %v1314 = vsub.f32 %v1025, %v1313
          %v1315 = vand.u32 %v1314, 4294901760
          %v1316 = vsub.f32 %v1314, %v1315
          %v1317 = vand.u32 %v1316, 4294901760
          %1318 = vmatpush1.msra.mxu0 %v1317
          %1319 = vmatprep.subr.mxu0 0.0
          %1320 = vmatpush2.msra.mxu0 0.0
          %1321 = vmatprep.subr.mxu0 0.0
          %1322 = vmatpush2.msra.mxu0 0.0
          %1323 = vmatprep.subr.mxu0 0.0
          %1324 = vmatpush2.msra.mxu0 0.0
          %1325 = vmatprep.subr.mxu0 0.0
          %1326 = vmatpush2.msra.mxu0 0.0
          %1327 = vmatprep.subr.mxu0 0.0
          %1328 = vmatpush2.msra.mxu0 0.0
          %1329 = vmatprep.subr.mxu0 0.0
          %1330 = vmatpush2.msra.mxu0 0.0
          %1331 = vmatprep.subr.mxu0 0.0
          %1332 = vmatpush2.msra.mxu0 0.0
          %1333 = vmatprep.subr.mxu0 0.0
          %1334 = vmatpush2.msra.mxu0 0.0
          %1335 = vmatprep.subr.mxu0 0.0
          %1336 = vmatpush2.msra.mxu0 0.0
          %1337 = vmatprep.subr.mxu0 0.0
          %1338 = vmatpush2.msra.mxu0 0.0
          %1339 = vmatprep.subr.mxu0 0.0
          %1340 = vmatpush2.msra.mxu0 0.0
          %1341 = vmatprep.subr.mxu0 0.0
          %1342 = vmatpush2.msra.mxu0 0.0
          %1343 = vmatprep.subr.mxu0 0.0
          %1344 = vmatpush2.msra.mxu0 0.0
          %1345 = vmatprep.subr.mxu0 0.0
          %1346 = vmatpush2.msra.mxu0 0.0
          %1347 = vmatprep.subr.mxu0 0.0
          %1348 = vmatpush2.msra.mxu0 0.0
          %1349 = vmatprep.subr.mxu0 0.0
          %1350 = vmatpush2.msra.mxu0 0.0
          %1351 = vmatprep.mubr.f32.mxu0 0.0
          %v1352 = vand.u32 %v1043, 4294901760
          %1353 = vmatmul.mubr.f32.gmra.mxu0 %v1352
          %v1354 = vpop.f32.mrf.mxu0
          %v1355 = vadd.f32 %v1154, %v1354
          %v1356 = vpop.f32.mrf.mxu0
          %1357 = vmatprep.mubr.f32.mxu0 0.0
          %v1358 = vand.u32 %v1046, 4294901760
          %1359 = vmatmul.mubr.f32.gmra.mxu0 %v1358
          %v1360 = vpop.f32.mrf.mxu0
          %v1361 = vadd.f32 %v1164, %v1360
          %v1362 = vpop.f32.mrf.mxu0
          %1363 = vmatprep.mubr.f32.mxu0 0.0
          %v1364 = vand.u32 %v1049, 4294901760
          %1365 = vmatmul.mubr.f32.gmra.mxu0 %v1364
          %v1366 = vpop.f32.mrf.mxu0
          %v1367 = vadd.f32 %v1174, %v1366
          %v1368 = vpop.f32.mrf.mxu0
          %1369 = vmatprep.mubr.f32.mxu0 0.0
          %v1370 = vand.u32 %v1052, 4294901760
          %1371 = vmatmul.mubr.f32.gmra.mxu0 %v1370
          %v1372 = vpop.f32.mrf.mxu0
          %v1373 = vadd.f32 %v1184, %v1372
          %v1374 = vpop.f32.mrf.mxu0
          %1375 = vmatprep.mubr.f32.mxu0 0.0
          %v1376 = vand.u32 %v1055, 4294901760
          %1377 = vmatmul.mubr.f32.gmra.mxu0 %v1376
          %v1378 = vpop.f32.mrf.mxu0
          %v1379 = vadd.f32 %v1194, %v1378
          %v1380 = vpop.f32.mrf.mxu0
          %1381 = vmatprep.mubr.f32.mxu0 0.0
          %v1382 = vand.u32 %v1058, 4294901760
          %1383 = vmatmul.mubr.f32.gmra.mxu0 %v1382
          %v1384 = vpop.f32.mrf.mxu0
          %v1385 = vadd.f32 %v1204, %v1384
          %v1386 = vpop.f32.mrf.mxu0
          %1387 = vmatprep.mubr.f32.mxu0 0.0
          %v1388 = vand.u32 %v1061, 4294901760
          %1389 = vmatmul.mubr.f32.gmra.mxu0 %v1388
          %v1390 = vpop.f32.mrf.mxu0
          %v1391 = vadd.f32 %v1214, %v1390
          %v1392 = vpop.f32.mrf.mxu0
          %1393 = vmatprep.mubr.f32.mxu0 0.0
          %v1394 = vand.u32 %v1064, 4294901760
          %1395 = vmatmul.mubr.f32.gmra.mxu0 %v1394
          %v1396 = vpop.f32.mrf.mxu0
          %v1397 = vadd.f32 %v1224, %v1396
          %v1398 = vpop.f32.mrf.mxu0
          %1399 = vmatprep.mubr.f32.mxu0 0.0
          %v1400 = vand.u32 %v1067, 4294901760
          %1401 = vmatmul.mubr.f32.gmra.mxu0 %v1400
          %v1402 = vpop.f32.mrf.mxu0
          %v1403 = vadd.f32 %v1234, %v1402
          %v1404 = vpop.f32.mrf.mxu0
          %1405 = vmatprep.mubr.f32.mxu0 0.0
          %v1406 = vand.u32 %v1070, 4294901760
          %1407 = vmatmul.mubr.f32.gmra.mxu0 %v1406
          %v1408 = vpop.f32.mrf.mxu0
          %v1409 = vadd.f32 %v1244, %v1408
          %v1410 = vpop.f32.mrf.mxu0
          %1411 = vmatprep.mubr.f32.mxu0 0.0
          %v1412 = vand.u32 %v1073, 4294901760
          %1413 = vmatmul.mubr.f32.gmra.mxu0 %v1412
          %v1414 = vpop.f32.mrf.mxu0
          %v1415 = vadd.f32 %v1254, %v1414
          %v1416 = vpop.f32.mrf.mxu0
          %1417 = vmatprep.mubr.f32.mxu0 0.0
          %v1418 = vand.u32 %v1076, 4294901760
          %1419 = vmatmul.mubr.f32.gmra.mxu0 %v1418
          %v1420 = vpop.f32.mrf.mxu0
          %v1421 = vadd.f32 %v1264, %v1420
          %v1422 = vpop.f32.mrf.mxu0
          %1423 = vdwg.mxu0
          %1424 = vmatprep.subr.mxu0 0.0
          %1425 = vmatpush1.msra.mxu0 0.0
          %1426 = vmatprep.subr.mxu0 0.0
          %1427 = vmatpush1.msra.mxu0 0.0
          %1428 = vmatprep.subr.mxu0 0.0
          %1429 = vmatpush1.msra.mxu0 0.0
          %1430 = vmatprep.subr.mxu0 0.0
          %1431 = vmatpush1.msra.mxu0 0.0
          %1432 = vmatprep.subr.mxu0 0.0
          %1433 = vmatpush1.msra.mxu0 0.0
          %1434 = vmatprep.subr.mxu0 0.0
          %1435 = vmatpush1.msra.mxu0 0.0
          %1436 = vmatprep.subr.mxu0 0.0
          %1437 = vmatpush1.msra.mxu0 0.0
          %1438 = vmatprep.subr.mxu0 0.0
          %1439 = vmatpush1.msra.mxu0 0.0
          %1440 = vmatprep.subr.mxu0 0.0
          %1441 = vmatpush1.msra.mxu0 0.0
          %1442 = vmatprep.subr.mxu0 0.0
          %1443 = vmatpush1.msra.mxu0 0.0
          %1444 = vmatprep.subr.mxu0 0.0
          %1445 = vmatpush1.msra.mxu0 0.0
          %1446 = vmatprep.subr.mxu0 0.0
          %1447 = vmatpush1.msra.mxu0 0.0
          %1448 = vmatprep.subr.mxu0 0.0
          %v1449 = vand.u32 %v1028, 4294901760
          %v1450 = vsub.f32 %v1028, %v1449
          %1451 = vmatpush1.msra.mxu0 %v1450
          %1452 = vmatprep.subr.mxu0 0.0
          %v1453 = vand.u32 %v1027, 4294901760
          %v1454 = vsub.f32 %v1027, %v1453
          %1455 = vmatpush1.msra.mxu0 %v1454
          %1456 = vmatprep.subr.mxu0 0.0
          %v1457 = vand.u32 %v1026, 4294901760
          %v1458 = vsub.f32 %v1026, %v1457
          %1459 = vmatpush1.msra.mxu0 %v1458
          %1460 = vmatprep.subr.mxu0 0.0
          %v1461 = vand.u32 %v1025, 4294901760
          %v1462 = vsub.f32 %v1025, %v1461
          %1463 = vmatpush1.msra.mxu0 %v1462
          %1464 = vmatprep.subr.mxu0 0.0
          %1465 = vmatpush2.msra.mxu0 0.0
          %1466 = vmatprep.subr.mxu0 0.0
          %1467 = vmatpush2.msra.mxu0 0.0
          %1468 = vmatprep.subr.mxu0 0.0
          %1469 = vmatpush2.msra.mxu0 0.0
          %1470 = vmatprep.subr.mxu0 0.0
          %1471 = vmatpush2.msra.mxu0 0.0
          %1472 = vmatprep.subr.mxu0 0.0
          %1473 = vmatpush2.msra.mxu0 0.0
          %1474 = vmatprep.subr.mxu0 0.0
          %1475 = vmatpush2.msra.mxu0 0.0
          %1476 = vmatprep.subr.mxu0 0.0
          %1477 = vmatpush2.msra.mxu0 0.0
          %1478 = vmatprep.subr.mxu0 0.0
          %1479 = vmatpush2.msra.mxu0 0.0
          %1480 = vmatprep.subr.mxu0 0.0
          %1481 = vmatpush2.msra.mxu0 0.0
          %1482 = vmatprep.subr.mxu0 0.0
          %1483 = vmatpush2.msra.mxu0 0.0
          %1484 = vmatprep.subr.mxu0 0.0
          %1485 = vmatpush2.msra.mxu0 0.0
          %1486 = vmatprep.subr.mxu0 0.0
          %1487 = vmatpush2.msra.mxu0 0.0
          %1488 = vmatprep.subr.mxu0 0.0
          %1489 = vmatpush2.msra.mxu0 0.0
          %1490 = vmatprep.subr.mxu0 0.0
          %1491 = vmatpush2.msra.mxu0 0.0
          %1492 = vmatprep.subr.mxu0 0.0
          %1493 = vmatpush2.msra.mxu0 0.0
          %1494 = vmatprep.subr.mxu0 0.0
          %1495 = vmatpush2.msra.mxu0 0.0
          %1496 = vmatprep.mubr.f32.mxu0 0.0
          %v1497 = vand.u32 %v1043, 4294901760
          %v1498 = vsub.f32 %v1043, %v1497
          %1499 = vmatmul.mubr.f32.gmra.mxu0 %v1498
          %v1500 = vpop.f32.mrf.mxu0
          %v1501 = vadd.f32 %v1355, %v1500
          %v1502 = vpop.f32.mrf.mxu0
          %1503 = vmatprep.mubr.f32.mxu0 0.0
          %v1504 = vand.u32 %v1046, 4294901760
          %v1505 = vsub.f32 %v1046, %v1504
          %1506 = vmatmul.mubr.f32.gmra.mxu0 %v1505
          %v1507 = vpop.f32.mrf.mxu0
          %v1508 = vadd.f32 %v1361, %v1507
          %v1509 = vpop.f32.mrf.mxu0
          %1510 = vmatprep.mubr.f32.mxu0 0.0
          %v1511 = vand.u32 %v1049, 4294901760
          %v1512 = vsub.f32 %v1049, %v1511
          %1513 = vmatmul.mubr.f32.gmra.mxu0 %v1512
          %v1514 = vpop.f32.mrf.mxu0
          %v1515 = vadd.f32 %v1367, %v1514
          %v1516 = vpop.f32.mrf.mxu0
          %1517 = vmatprep.mubr.f32.mxu0 0.0
          %v1518 = vand.u32 %v1052, 4294901760
          %v1519 = vsub.f32 %v1052, %v1518
          %1520 = vmatmul.mubr.f32.gmra.mxu0 %v1519
          %v1521 = vpop.f32.mrf.mxu0
          %v1522 = vadd.f32 %v1373, %v1521
          %v1523 = vpop.f32.mrf.mxu0
          %1524 = vmatprep.mubr.f32.mxu0 0.0
          %v1525 = vand.u32 %v1055, 4294901760
          %v1526 = vsub.f32 %v1055, %v1525
          %1527 = vmatmul.mubr.f32.gmra.mxu0 %v1526
          %v1528 = vpop.f32.mrf.mxu0
          %v1529 = vadd.f32 %v1379, %v1528
          %v1530 = vpop.f32.mrf.mxu0
          %1531 = vmatprep.mubr.f32.mxu0 0.0
          %v1532 = vand.u32 %v1058, 4294901760
          %v1533 = vsub.f32 %v1058, %v1532
          %1534 = vmatmul.mubr.f32.gmra.mxu0 %v1533
          %v1535 = vpop.f32.mrf.mxu0
          %v1536 = vadd.f32 %v1385, %v1535
          %v1537 = vpop.f32.mrf.mxu0
          %1538 = vmatprep.mubr.f32.mxu0 0.0
          %v1539 = vand.u32 %v1061, 4294901760
          %v1540 = vsub.f32 %v1061, %v1539
          %1541 = vmatmul.mubr.f32.gmra.mxu0 %v1540
          %v1542 = vpop.f32.mrf.mxu0
          %v1543 = vadd.f32 %v1391, %v1542
          %v1544 = vpop.f32.mrf.mxu0
          %1545 = vmatprep.mubr.f32.mxu0 0.0
          %v1546 = vand.u32 %v1064, 4294901760
          %v1547 = vsub.f32 %v1064, %v1546
          %1548 = vmatmul.mubr.f32.gmra.mxu0 %v1547
          %v1549 = vpop.f32.mrf.mxu0
          %v1550 = vadd.f32 %v1397, %v1549
          %v1551 = vpop.f32.mrf.mxu0
          %1552 = vmatprep.mubr.f32.mxu0 0.0
          %v1553 = vand.u32 %v1067, 4294901760
          %v1554 = vsub.f32 %v1067, %v1553
          %1555 = vmatmul.mubr.f32.gmra.mxu0 %v1554
          %v1556 = vpop.f32.mrf.mxu0
          %v1557 = vadd.f32 %v1403, %v1556
          %v1558 = vpop.f32.mrf.mxu0
          %1559 = vmatprep.mubr.f32.mxu0 0.0
          %v1560 = vand.u32 %v1070, 4294901760
          %v1561 = vsub.f32 %v1070, %v1560
          %1562 = vmatmul.mubr.f32.gmra.mxu0 %v1561
          %v1563 = vpop.f32.mrf.mxu0
          %v1564 = vadd.f32 %v1409, %v1563
          %v1565 = vpop.f32.mrf.mxu0
          %1566 = vmatprep.mubr.f32.mxu0 0.0
          %v1567 = vand.u32 %v1073, 4294901760
          %v1568 = vsub.f32 %v1073, %v1567
          %1569 = vmatmul.mubr.f32.gmra.mxu0 %v1568
          %v1570 = vpop.f32.mrf.mxu0
          %v1571 = vadd.f32 %v1415, %v1570
          %v1572 = vpop.f32.mrf.mxu0
          %1573 = vmatprep.mubr.f32.mxu0 0.0
          %v1574 = vand.u32 %v1076, 4294901760
          %v1575 = vsub.f32 %v1076, %v1574
          %1576 = vmatmul.mubr.f32.gmra.mxu0 %v1575
          %v1577 = vpop.f32.mrf.mxu0
          %v1578 = vadd.f32 %v1421, %v1577
          %v1579 = vpop.f32.mrf.mxu0
          %1580 = vdwg.mxu0
          %1581 = vmatprep.subr.mxu0 0.0
          %1582 = vmatpush1.msra.mxu0 0.0
          %1583 = vmatprep.subr.mxu0 0.0
          %1584 = vmatpush1.msra.mxu0 0.0
          %1585 = vmatprep.subr.mxu0 0.0
          %1586 = vmatpush1.msra.mxu0 0.0
          %1587 = vmatprep.subr.mxu0 0.0
          %1588 = vmatpush1.msra.mxu0 0.0
          %1589 = vmatprep.subr.mxu0 0.0
          %1590 = vmatpush1.msra.mxu0 0.0
          %1591 = vmatprep.subr.mxu0 0.0
          %1592 = vmatpush1.msra.mxu0 0.0
          %1593 = vmatprep.subr.mxu0 0.0
          %1594 = vmatpush1.msra.mxu0 0.0
          %1595 = vmatprep.subr.mxu0 0.0
          %1596 = vmatpush1.msra.mxu0 0.0
          %1597 = vmatprep.subr.mxu0 0.0
          %1598 = vmatpush1.msra.mxu0 0.0
          %1599 = vmatprep.subr.mxu0 0.0
          %1600 = vmatpush1.msra.mxu0 0.0
          %1601 = vmatprep.subr.mxu0 0.0
          %1602 = vmatpush1.msra.mxu0 0.0
          %1603 = vmatprep.subr.mxu0 0.0
          %1604 = vmatpush1.msra.mxu0 0.0
          %1605 = vmatprep.subr.mxu0 0.0
          %v1606 = vand.u32 %v1028, 4294901760
          %1607 = vmatpush1.msra.mxu0 %v1606
          %1608 = vmatprep.subr.mxu0 0.0
          %v1609 = vand.u32 %v1027, 4294901760
          %1610 = vmatpush1.msra.mxu0 %v1609
          %1611 = vmatprep.subr.mxu0 0.0
          %v1612 = vand.u32 %v1026, 4294901760
          %1613 = vmatpush1.msra.mxu0 %v1612
          %1614 = vmatprep.subr.mxu0 0.0
          %v1615 = vand.u32 %v1025, 4294901760
          %1616 = vmatpush1.msra.mxu0 %v1615
          %1617 = vmatprep.subr.mxu0 0.0
          %1618 = vmatpush2.msra.mxu0 0.0
          %1619 = vmatprep.subr.mxu0 0.0
          %1620 = vmatpush2.msra.mxu0 0.0
          %1621 = vmatprep.subr.mxu0 0.0
          %1622 = vmatpush2.msra.mxu0 0.0
          %1623 = vmatprep.subr.mxu0 0.0
          %1624 = vmatpush2.msra.mxu0 0.0
          %1625 = vmatprep.subr.mxu0 0.0
          %1626 = vmatpush2.msra.mxu0 0.0
          %1627 = vmatprep.subr.mxu0 0.0
          %1628 = vmatpush2.msra.mxu0 0.0
          %1629 = vmatprep.subr.mxu0 0.0
          %1630 = vmatpush2.msra.mxu0 0.0
          %1631 = vmatprep.subr.mxu0 0.0
          %1632 = vmatpush2.msra.mxu0 0.0
          %1633 = vmatprep.subr.mxu0 0.0
          %1634 = vmatpush2.msra.mxu0 0.0
          %1635 = vmatprep.subr.mxu0 0.0
          %1636 = vmatpush2.msra.mxu0 0.0
          %1637 = vmatprep.subr.mxu0 0.0
          %1638 = vmatpush2.msra.mxu0 0.0
          %1639 = vmatprep.subr.mxu0 0.0
          %1640 = vmatpush2.msra.mxu0 0.0
          %1641 = vmatprep.subr.mxu0 0.0
          %1642 = vmatpush2.msra.mxu0 0.0
          %1643 = vmatprep.subr.mxu0 0.0
          %1644 = vmatpush2.msra.mxu0 0.0
          %1645 = vmatprep.subr.mxu0 0.0
          %1646 = vmatpush2.msra.mxu0 0.0
          %1647 = vmatprep.subr.mxu0 0.0
          %1648 = vmatpush2.msra.mxu0 0.0
          %1649 = vmatprep.mubr.f32.mxu0 0.0
          %v1650 = vand.u32 %v1043, 4294901760
          %v1651 = vsub.f32 %v1043, %v1650
          %v1652 = vand.u32 %v1651, 4294901760
          %1653 = vmatmul.mubr.f32.gmra.mxu0 %v1652
          %v1654 = vpop.f32.mrf.mxu0
          %v1655 = vadd.f32 %v1501, %v1654
          %v1656 = vpop.f32.mrf.mxu0
          %1657 = vmatprep.mubr.f32.mxu0 0.0
          %v1658 = vand.u32 %v1046, 4294901760
          %v1659 = vsub.f32 %v1046, %v1658
          %v1660 = vand.u32 %v1659, 4294901760
          %1661 = vmatmul.mubr.f32.gmra.mxu0 %v1660
          %v1662 = vpop.f32.mrf.mxu0
          %v1663 = vadd.f32 %v1508, %v1662
          %v1664 = vpop.f32.mrf.mxu0
          %1665 = vmatprep.mubr.f32.mxu0 0.0
          %v1666 = vand.u32 %v1049, 4294901760
          %v1667 = vsub.f32 %v1049, %v1666
          %v1668 = vand.u32 %v1667, 4294901760
          %1669 = vmatmul.mubr.f32.gmra.mxu0 %v1668
          %v1670 = vpop.f32.mrf.mxu0
          %v1671 = vadd.f32 %v1515, %v1670
          %v1672 = vpop.f32.mrf.mxu0
          %1673 = vmatprep.mubr.f32.mxu0 0.0
          %v1674 = vand.u32 %v1052, 4294901760
          %v1675 = vsub.f32 %v1052, %v1674
          %v1676 = vand.u32 %v1675, 4294901760
          %1677 = vmatmul.mubr.f32.gmra.mxu0 %v1676
          %v1678 = vpop.f32.mrf.mxu0
          %v1679 = vadd.f32 %v1522, %v1678
          %v1680 = vpop.f32.mrf.mxu0
          %1681 = vmatprep.mubr.f32.mxu0 0.0
          %v1682 = vand.u32 %v1055, 4294901760
          %v1683 = vsub.f32 %v1055, %v1682
          %v1684 = vand.u32 %v1683, 4294901760
          %1685 = vmatmul.mubr.f32.gmra.mxu0 %v1684
          %v1686 = vpop.f32.mrf.mxu0
          %v1687 = vadd.f32 %v1529, %v1686
          %v1688 = vpop.f32.mrf.mxu0
          %1689 = vmatprep.mubr.f32.mxu0 0.0
          %v1690 = vand.u32 %v1058, 4294901760
          %v1691 = vsub.f32 %v1058, %v1690
          %v1692 = vand.u32 %v1691, 4294901760
          %1693 = vmatmul.mubr.f32.gmra.mxu0 %v1692
          %v1694 = vpop.f32.mrf.mxu0
          %v1695 = vadd.f32 %v1536, %v1694
          %v1696 = vpop.f32.mrf.mxu0
          %1697 = vmatprep.mubr.f32.mxu0 0.0
          %v1698 = vand.u32 %v1061, 4294901760
          %v1699 = vsub.f32 %v1061, %v1698
          %v1700 = vand.u32 %v1699, 4294901760
          %1701 = vmatmul.mubr.f32.gmra.mxu0 %v1700
          %v1702 = vpop.f32.mrf.mxu0
          %v1703 = vadd.f32 %v1543, %v1702
          %v1704 = vpop.f32.mrf.mxu0
          %1705 = vmatprep.mubr.f32.mxu0 0.0
          %v1706 = vand.u32 %v1064, 4294901760
          %v1707 = vsub.f32 %v1064, %v1706
          %v1708 = vand.u32 %v1707, 4294901760
          %1709 = vmatmul.mubr.f32.gmra.mxu0 %v1708
          %v1710 = vpop.f32.mrf.mxu0
          %v1711 = vadd.f32 %v1550, %v1710
          %v1712 = vpop.f32.mrf.mxu0
          %1713 = vmatprep.mubr.f32.mxu0 0.0
          %v1714 = vand.u32 %v1067, 4294901760
          %v1715 = vsub.f32 %v1067, %v1714
          %v1716 = vand.u32 %v1715, 4294901760
          %1717 = vmatmul.mubr.f32.gmra.mxu0 %v1716
          %v1718 = vpop.f32.mrf.mxu0
          %v1719 = vadd.f32 %v1557, %v1718
          %v1720 = vpop.f32.mrf.mxu0
          %1721 = vmatprep.mubr.f32.mxu0 0.0
          %v1722 = vand.u32 %v1070, 4294901760
          %v1723 = vsub.f32 %v1070, %v1722
          %v1724 = vand.u32 %v1723, 4294901760
          %1725 = vmatmul.mubr.f32.gmra.mxu0 %v1724
          %v1726 = vpop.f32.mrf.mxu0
          %v1727 = vadd.f32 %v1564, %v1726
          %v1728 = vpop.f32.mrf.mxu0
          %1729 = vmatprep.mubr.f32.mxu0 0.0
          %v1730 = vand.u32 %v1073, 4294901760
          %v1731 = vsub.f32 %v1073, %v1730
          %v1732 = vand.u32 %v1731, 4294901760
          %1733 = vmatmul.mubr.f32.gmra.mxu0 %v1732
          %v1734 = vpop.f32.mrf.mxu0
          %v1735 = vadd.f32 %v1571, %v1734
          %v1736 = vpop.f32.mrf.mxu0
          %1737 = vmatprep.mubr.f32.mxu0 0.0
          %v1738 = vand.u32 %v1076, 4294901760
          %v1739 = vsub.f32 %v1076, %v1738
          %v1740 = vand.u32 %v1739, 4294901760
          %1741 = vmatmul.mubr.f32.gmra.mxu0 %v1740
          %v1742 = vpop.f32.mrf.mxu0
          %v1743 = vadd.f32 %v1578, %v1742
          %v1744 = vpop.f32.mrf.mxu0
          %1745 = vdwg.mxu0
          %1746 = vmatprep.subr.mxu0 0.0
          %1747 = vmatpush1.msra.mxu0 0.0
          %1748 = vmatprep.subr.mxu0 0.0
          %1749 = vmatpush1.msra.mxu0 0.0
          %1750 = vmatprep.subr.mxu0 0.0
          %1751 = vmatpush1.msra.mxu0 0.0
          %1752 = vmatprep.subr.mxu0 0.0
          %1753 = vmatpush1.msra.mxu0 0.0
          %1754 = vmatprep.subr.mxu0 0.0
          %1755 = vmatpush1.msra.mxu0 0.0
          %1756 = vmatprep.subr.mxu0 0.0
          %1757 = vmatpush1.msra.mxu0 0.0
          %1758 = vmatprep.subr.mxu0 0.0
          %1759 = vmatpush1.msra.mxu0 0.0
          %1760 = vmatprep.subr.mxu0 0.0
          %1761 = vmatpush1.msra.mxu0 0.0
          %1762 = vmatprep.subr.mxu0 0.0
          %1763 = vmatpush1.msra.mxu0 0.0
          %1764 = vmatprep.subr.mxu0 0.0
          %1765 = vmatpush1.msra.mxu0 0.0
          %1766 = vmatprep.subr.mxu0 0.0
          %1767 = vmatpush1.msra.mxu0 0.0
          %1768 = vmatprep.subr.mxu0 0.0
          %1769 = vmatpush1.msra.mxu0 0.0
          %1770 = vmatprep.subr.mxu0 0.0
          %v1771 = vand.u32 %v1028, 4294901760
          %v1772 = vsub.f32 %v1028, %v1771
          %v1773 = vand.u32 %v1772, 4294901760
          %1774 = vmatpush1.msra.mxu0 %v1773
          %1775 = vmatprep.subr.mxu0 0.0
          %v1776 = vand.u32 %v1027, 4294901760
          %v1777 = vsub.f32 %v1027, %v1776
          %v1778 = vand.u32 %v1777, 4294901760
          %1779 = vmatpush1.msra.mxu0 %v1778
          %1780 = vmatprep.subr.mxu0 0.0
          %v1781 = vand.u32 %v1026, 4294901760
          %v1782 = vsub.f32 %v1026, %v1781
          %v1783 = vand.u32 %v1782, 4294901760
          %1784 = vmatpush1.msra.mxu0 %v1783
          %1785 = vmatprep.subr.mxu0 0.0
          %v1786 = vand.u32 %v1025, 4294901760
          %v1787 = vsub.f32 %v1025, %v1786
          %v1788 = vand.u32 %v1787, 4294901760
          %1789 = vmatpush1.msra.mxu0 %v1788
          %1790 = vmatprep.subr.mxu0 0.0
          %1791 = vmatpush2.msra.mxu0 0.0
          %1792 = vmatprep.subr.mxu0 0.0
          %1793 = vmatpush2.msra.mxu0 0.0
          %1794 = vmatprep.subr.mxu0 0.0
          %1795 = vmatpush2.msra.mxu0 0.0
          %1796 = vmatprep.subr.mxu0 0.0
          %1797 = vmatpush2.msra.mxu0 0.0
          %1798 = vmatprep.subr.mxu0 0.0
          %1799 = vmatpush2.msra.mxu0 0.0
          %1800 = vmatprep.subr.mxu0 0.0
          %1801 = vmatpush2.msra.mxu0 0.0
          %1802 = vmatprep.subr.mxu0 0.0
          %1803 = vmatpush2.msra.mxu0 0.0
          %1804 = vmatprep.subr.mxu0 0.0
          %1805 = vmatpush2.msra.mxu0 0.0
          %1806 = vmatprep.subr.mxu0 0.0
          %1807 = vmatpush2.msra.mxu0 0.0
          %1808 = vmatprep.subr.mxu0 0.0
          %1809 = vmatpush2.msra.mxu0 0.0
          %1810 = vmatprep.subr.mxu0 0.0
          %1811 = vmatpush2.msra.mxu0 0.0
          %1812 = vmatprep.subr.mxu0 0.0
          %1813 = vmatpush2.msra.mxu0 0.0
          %1814 = vmatprep.subr.mxu0 0.0
          %1815 = vmatpush2.msra.mxu0 0.0
          %1816 = vmatprep.subr.mxu0 0.0
          %1817 = vmatpush2.msra.mxu0 0.0
          %1818 = vmatprep.subr.mxu0 0.0
          %1819 = vmatpush2.msra.mxu0 0.0
          %1820 = vmatprep.subr.mxu0 0.0
          %1821 = vmatpush2.msra.mxu0 0.0
          %1822 = vmatprep.mubr.f32.mxu0 0.0
          %v1823 = vand.u32 %v1043, 4294901760
          %1824 = vmatmul.mubr.f32.gmra.mxu0 %v1823
          %v1825 = vpop.f32.mrf.mxu0
          %v1826 = vadd.f32 %v1655, %v1825
          %v1827 = vpop.f32.mrf.mxu0
          %1828 = vmatprep.mubr.f32.mxu0 0.0
          %v1829 = vand.u32 %v1046, 4294901760
          %1830 = vmatmul.mubr.f32.gmra.mxu0 %v1829
          %v1831 = vpop.f32.mrf.mxu0
          %v1832 = vadd.f32 %v1663, %v1831
          %v1833 = vpop.f32.mrf.mxu0
          %1834 = vmatprep.mubr.f32.mxu0 0.0
          %v1835 = vand.u32 %v1049, 4294901760
          %1836 = vmatmul.mubr.f32.gmra.mxu0 %v1835
          %v1837 = vpop.f32.mrf.mxu0
          %v1838 = vadd.f32 %v1671, %v1837
          %v1839 = vpop.f32.mrf.mxu0
          %1840 = vmatprep.mubr.f32.mxu0 0.0
          %v1841 = vand.u32 %v1052, 4294901760
          %1842 = vmatmul.mubr.f32.gmra.mxu0 %v1841
          %v1843 = vpop.f32.mrf.mxu0
          %v1844 = vadd.f32 %v1679, %v1843
          %v1845 = vpop.f32.mrf.mxu0
          %1846 = vmatprep.mubr.f32.mxu0 0.0
          %v1847 = vand.u32 %v1055, 4294901760
          %1848 = vmatmul.mubr.f32.gmra.mxu0 %v1847
          %v1849 = vpop.f32.mrf.mxu0
          %v1850 = vadd.f32 %v1687, %v1849
          %v1851 = vpop.f32.mrf.mxu0
          %1852 = vmatprep.mubr.f32.mxu0 0.0
          %v1853 = vand.u32 %v1058, 4294901760
          %1854 = vmatmul.mubr.f32.gmra.mxu0 %v1853
          %v1855 = vpop.f32.mrf.mxu0
          %v1856 = vadd.f32 %v1695, %v1855
          %v1857 = vpop.f32.mrf.mxu0
          %1858 = vmatprep.mubr.f32.mxu0 0.0
          %v1859 = vand.u32 %v1061, 4294901760
          %1860 = vmatmul.mubr.f32.gmra.mxu0 %v1859
          %v1861 = vpop.f32.mrf.mxu0
          %v1862 = vadd.f32 %v1703, %v1861
          %v1863 = vpop.f32.mrf.mxu0
          %1864 = vmatprep.mubr.f32.mxu0 0.0
          %v1865 = vand.u32 %v1064, 4294901760
          %1866 = vmatmul.mubr.f32.gmra.mxu0 %v1865
          %v1867 = vpop.f32.mrf.mxu0
          %v1868 = vadd.f32 %v1711, %v1867
          %v1869 = vpop.f32.mrf.mxu0
          %1870 = vmatprep.mubr.f32.mxu0 0.0
          %v1871 = vand.u32 %v1067, 4294901760
          %1872 = vmatmul.mubr.f32.gmra.mxu0 %v1871
          %v1873 = vpop.f32.mrf.mxu0
          %v1874 = vadd.f32 %v1719, %v1873
          %v1875 = vpop.f32.mrf.mxu0
          %1876 = vmatprep.mubr.f32.mxu0 0.0
          %v1877 = vand.u32 %v1070, 4294901760
          %1878 = vmatmul.mubr.f32.gmra.mxu0 %v1877
          %v1879 = vpop.f32.mrf.mxu0
          %v1880 = vadd.f32 %v1727, %v1879
          %v1881 = vpop.f32.mrf.mxu0
          %1882 = vmatprep.mubr.f32.mxu0 0.0
          %v1883 = vand.u32 %v1073, 4294901760
          %1884 = vmatmul.mubr.f32.gmra.mxu0 %v1883
          %v1885 = vpop.f32.mrf.mxu0
          %v1886 = vadd.f32 %v1735, %v1885
          %v1887 = vpop.f32.mrf.mxu0
          %1888 = vmatprep.mubr.f32.mxu0 0.0
          %v1889 = vand.u32 %v1076, 4294901760
          %1890 = vmatmul.mubr.f32.gmra.mxu0 %v1889
          %v1891 = vpop.f32.mrf.mxu0
          %v1892 = vadd.f32 %v1743, %v1891
          %v1893 = vpop.f32.mrf.mxu0
          %1894 = vdwg.mxu0
          %1895 = vmatprep.subr.mxu0 0.0
          %1896 = vmatpush1.msra.mxu0 0.0
          %1897 = vmatprep.subr.mxu0 0.0
          %1898 = vmatpush1.msra.mxu0 0.0
          %1899 = vmatprep.subr.mxu0 0.0
          %1900 = vmatpush1.msra.mxu0 0.0
          %1901 = vmatprep.subr.mxu0 0.0
          %1902 = vmatpush1.msra.mxu0 0.0
          %1903 = vmatprep.subr.mxu0 0.0
          %1904 = vmatpush1.msra.mxu0 0.0
          %1905 = vmatprep.subr.mxu0 0.0
          %1906 = vmatpush1.msra.mxu0 0.0
          %1907 = vmatprep.subr.mxu0 0.0
          %1908 = vmatpush1.msra.mxu0 0.0
          %1909 = vmatprep.subr.mxu0 0.0
          %1910 = vmatpush1.msra.mxu0 0.0
          %1911 = vmatprep.subr.mxu0 0.0
          %1912 = vmatpush1.msra.mxu0 0.0
          %1913 = vmatprep.subr.mxu0 0.0
          %1914 = vmatpush1.msra.mxu0 0.0
          %1915 = vmatprep.subr.mxu0 0.0
          %1916 = vmatpush1.msra.mxu0 0.0
          %1917 = vmatprep.subr.mxu0 0.0
          %1918 = vmatpush1.msra.mxu0 0.0
          %1919 = vmatprep.subr.mxu0 0.0
          %v1920 = vand.u32 %v1028, 4294901760
          %1921 = vmatpush1.msra.mxu0 %v1920
          %1922 = vmatprep.subr.mxu0 0.0
          %v1923 = vand.u32 %v1027, 4294901760
          %1924 = vmatpush1.msra.mxu0 %v1923
          %1925 = vmatprep.subr.mxu0 0.0
          %v1926 = vand.u32 %v1026, 4294901760
          %1927 = vmatpush1.msra.mxu0 %v1926
          %1928 = vmatprep.subr.mxu0 0.0
          %v1929 = vand.u32 %v1025, 4294901760
          %1930 = vmatpush1.msra.mxu0 %v1929
          %1931 = vmatprep.subr.mxu0 0.0
          %1932 = vmatpush2.msra.mxu0 0.0
          %1933 = vmatprep.subr.mxu0 0.0
          %1934 = vmatpush2.msra.mxu0 0.0
          %1935 = vmatprep.subr.mxu0 0.0
          %1936 = vmatpush2.msra.mxu0 0.0
          %1937 = vmatprep.subr.mxu0 0.0
          %1938 = vmatpush2.msra.mxu0 0.0
          %1939 = vmatprep.subr.mxu0 0.0
          %1940 = vmatpush2.msra.mxu0 0.0
          %1941 = vmatprep.subr.mxu0 0.0
          %1942 = vmatpush2.msra.mxu0 0.0
          %1943 = vmatprep.subr.mxu0 0.0
          %1944 = vmatpush2.msra.mxu0 0.0
          %1945 = vmatprep.subr.mxu0 0.0
          %1946 = vmatpush2.msra.mxu0 0.0
          %1947 = vmatprep.subr.mxu0 0.0
          %1948 = vmatpush2.msra.mxu0 0.0
          %1949 = vmatprep.subr.mxu0 0.0
          %1950 = vmatpush2.msra.mxu0 0.0
          %1951 = vmatprep.subr.mxu0 0.0
          %1952 = vmatpush2.msra.mxu0 0.0
          %1953 = vmatprep.subr.mxu0 0.0
          %1954 = vmatpush2.msra.mxu0 0.0
          %1955 = vmatprep.subr.mxu0 0.0
          %1956 = vmatpush2.msra.mxu0 0.0
          %1957 = vmatprep.subr.mxu0 0.0
          %1958 = vmatpush2.msra.mxu0 0.0
          %1959 = vmatprep.subr.mxu0 0.0
          %1960 = vmatpush2.msra.mxu0 0.0
          %1961 = vmatprep.subr.mxu0 0.0
          %1962 = vmatpush2.msra.mxu0 0.0
          %1963 = vmatprep.mubr.f32.mxu0 0.0
          %v1964 = vand.u32 %v1043, 4294901760
          %1965 = vmatmul.mubr.f32.gmra.mxu0 %v1964
          %v1966 = vpop.f32.mrf.mxu0
          %v1967 = vadd.f32 %v1826, %v1966
          %v1968 = vpop.f32.mrf.mxu0
          %1969 = vmatprep.mubr.f32.mxu0 0.0
          %v1970 = vand.u32 %v1046, 4294901760
          %1971 = vmatmul.mubr.f32.gmra.mxu0 %v1970
          %v1972 = vpop.f32.mrf.mxu0
          %v1973 = vadd.f32 %v1832, %v1972
          %v1974 = vpop.f32.mrf.mxu0
          %1975 = vmatprep.mubr.f32.mxu0 0.0
          %v1976 = vand.u32 %v1049, 4294901760
          %1977 = vmatmul.mubr.f32.gmra.mxu0 %v1976
          %v1978 = vpop.f32.mrf.mxu0
          %v1979 = vadd.f32 %v1838, %v1978
          %v1980 = vpop.f32.mrf.mxu0
          %1981 = vmatprep.mubr.f32.mxu0 0.0
          %v1982 = vand.u32 %v1052, 4294901760
          %1983 = vmatmul.mubr.f32.gmra.mxu0 %v1982
          %v1984 = vpop.f32.mrf.mxu0
          %v1985 = vadd.f32 %v1844, %v1984
          %v1986 = vpop.f32.mrf.mxu0
          %1987 = vmatprep.mubr.f32.mxu0 0.0
          %v1988 = vand.u32 %v1055, 4294901760
          %1989 = vmatmul.mubr.f32.gmra.mxu0 %v1988
          %v1990 = vpop.f32.mrf.mxu0
          %v1991 = vadd.f32 %v1850, %v1990
          %v1992 = vpop.f32.mrf.mxu0
          %1993 = vmatprep.mubr.f32.mxu0 0.0
          %v1994 = vand.u32 %v1058, 4294901760
          %1995 = vmatmul.mubr.f32.gmra.mxu0 %v1994
          %v1996 = vpop.f32.mrf.mxu0
          %v1997 = vadd.f32 %v1856, %v1996
          %v1998 = vpop.f32.mrf.mxu0
          %1999 = vmatprep.mubr.f32.mxu0 0.0
          %v2000 = vand.u32 %v1061, 4294901760
          %2001 = vmatmul.mubr.f32.gmra.mxu0 %v2000
          %v2002 = vpop.f32.mrf.mxu0
          %v2003 = vadd.f32 %v1862, %v2002
          %v2004 = vpop.f32.mrf.mxu0
          %2005 = vmatprep.mubr.f32.mxu0 0.0
          %v2006 = vand.u32 %v1064, 4294901760
          %2007 = vmatmul.mubr.f32.gmra.mxu0 %v2006
          %v2008 = vpop.f32.mrf.mxu0
          %v2009 = vadd.f32 %v1868, %v2008
          %v2010 = vpop.f32.mrf.mxu0
          %2011 = vmatprep.mubr.f32.mxu0 0.0
          %v2012 = vand.u32 %v1067, 4294901760
          %2013 = vmatmul.mubr.f32.gmra.mxu0 %v2012
          %v2014 = vpop.f32.mrf.mxu0
          %v2015 = vadd.f32 %v1874, %v2014
          %v2016 = vpop.f32.mrf.mxu0
          %2017 = vmatprep.mubr.f32.mxu0 0.0
          %v2018 = vand.u32 %v1070, 4294901760
          %2019 = vmatmul.mubr.f32.gmra.mxu0 %v2018
          %v2020 = vpop.f32.mrf.mxu0
          %v2021 = vadd.f32 %v1880, %v2020
          %v2022 = vpop.f32.mrf.mxu0
          %2023 = vmatprep.mubr.f32.mxu0 0.0
          %v2024 = vand.u32 %v1073, 4294901760
          %2025 = vmatmul.mubr.f32.gmra.mxu0 %v2024
          %v2026 = vpop.f32.mrf.mxu0
          %v2027 = vadd.f32 %v1886, %v2026
          %v2028 = vpop.f32.mrf.mxu0
          %2029 = vmatprep.mubr.f32.mxu0 0.0
          %v2030 = vand.u32 %v1076, 4294901760
          %2031 = vmatmul.mubr.f32.gmra.mxu0 %v2030
          %v2032 = vpop.f32.mrf.mxu0
          %v2033 = vadd.f32 %v1892, %v2032
          %v2034 = vpop.f32.mrf.mxu0
          %2035 = vdwg.mxu0
          %2036 = vst.msk [vmem:[%s319] sm:$0xff] %vm1041, %v1967
          %2037 = vst.msk [vmem:[%s319 + $0x8] sm:$0xff] %vm1041, %v1973
          %2038 = vst.msk [vmem:[%s319 + $0x10] sm:$0xff] %vm1041, %v1979
          %2039 = vst.msk [vmem:[%s319 + $0x18] sm:$0xff] %vm1041, %v1985
          %2040 = vst.msk [vmem:[%s319 + $0x20] sm:$0xff] %vm1041, %v1991
          %2041 = vst.msk [vmem:[%s319 + $0x28] sm:$0xff] %vm1041, %v1997
          %2042 = vst.msk [vmem:[%s319 + $0x30] sm:$0xff] %vm1041, %v2003
          %2043 = vst.msk [vmem:[%s319 + $0x38] sm:$0xff] %vm1041, %v2009
          %2044 = vst.msk [vmem:[%s319 + $0x40] sm:$0xff] %vm1041, %v2015
          %2045 = vst.msk [vmem:[%s319 + $0x48] sm:$0xff] %vm1041, %v2021
          %2046 = vst.msk [vmem:[%s319 + $0x50] sm:$0xff] %vm1041, %v2027
          %2047 = vst.msk [vmem:[%s319 + $0x58] sm:$0xff] %vm1041, %v2033
        $region82: #{simclr_pretrain_post_transform.1} parent=35 // pred_fallthru
          _
        %s2048 = sand.u32 %s143, 1
        %s2049 = scalar_lea.sflag [#allocation6], %s2048
        %s2050 = sand.u32 %s143, 1
        %s2051 = smul.addr %s2050, 96
        %s2052 = scalar_lea.vmem [#allocation12], %s2051
        // Predicated region
        $region83: #{simclr_pretrain_post_transform.1} parent=35 // pred_check
          %p2053 = pneg %p153
        $region84: #{simclr_pretrain_post_transform.1} parent=35 // pred_check_branch
          %2055 = sbr.rel (%p2053) target = $region86
        $region85: #{simclr_pretrain_post_transform.1} parent=35 // pred_region
          %s2057 = ssub.s32 1536, 1536
          %2058 = vsyncadd %s2049, %s2057
          %s2059 = smul.addr %s32, 12
          %s2060 = smul.addr %s2059, 128
          %s2061 = scalar_lea.hbm %s5, %s2060
          %s2062 = sshll.u32 %s2052, 4
          %s2063 = int_to_ptr.vmem [resolvable:$true] %s2062
          %2068 = dma.vmem_to_hbm [thread:$0]  %s2063, 1536, %s2061, %s2049, 128, 128, 8
        $region86: #{simclr_pretrain_post_transform.1} parent=35 // pred_fallthru
          _
      $region36: #{simclr_pretrain_post_transform.1} parent=5 // pred_fallthru
        _
      %p2069 = scmp.le.s32.totalorder 2, %s27
      // Predicated region
      $region87: #{simclr_pretrain_post_transform.1} parent=5 // pred_check
        %p2070 = pneg %p2069
      $region88: #{simclr_pretrain_post_transform.1} parent=5 // pred_check_branch
        %2072 = sbr.rel (%p2070) target = $region90
      $region89: #{simclr_pretrain_post_transform.1} parent=5 // pred_region
        %s2073 = ssub.s32 %s27, 2
        // Predicated region
        $region91: #{simclr_pretrain_post_transform.1} parent=89 // pred_check
          %p2074 = pneg %p159
        $region92: #{simclr_pretrain_post_transform.1} parent=89 // pred_check_branch
          %2076 = sbr.rel (%p2074) target = $region94
        $region93: #{simclr_pretrain_post_transform.1} parent=89 // pred_region
          %s2077 = sand.u32 %s144, 1
          %s2078 = scalar_lea.sflag [#allocation6], %s2077
          %s2079 = sand.u32 %s144, 1
          %s2080 = smul.addr %s2079, 96
          %s2081 = scalar_lea.vmem [#allocation12], %s2080
          %2082 = dma.done %s2078, 1536
        $region94: #{simclr_pretrain_post_transform.1} parent=89 // pred_fallthru
          _
      $region90: #{simclr_pretrain_post_transform.1} parent=5 // pred_fallthru
        _
    $region6: #{simclr_pretrain_post_transform.1} parent=1 // loop_footer
      %s31 = sadd.s32 1, %s27
    $region7: #{simclr_pretrain_post_transform.1} parent=1 // loop_footer_branch
      %26 = sbr.rel target = $region3
    $region8: #{simclr_pretrain_post_transform.1} parent=1 // loop_exit
      _
    %2083 = vsyncpa [#allocation5], 1
    %s2084 = scalar_lea.sflag [#allocation5], 1
    %2085 = vsyncpa %s2084, 1
    %2086 = vsyncpa [#allocation10], 1
    %s2087 = scalar_lea.sflag [#allocation10], 1
    %2088 = vsyncpa %s2087, 1
    %2089 = vsyncpa [#allocation6], 1
    %s2090 = scalar_lea.sflag [#allocation6], 1
    %2091 = vsyncpa %s2090, 1
    %2092 = vsyncpa [#allocation7], 1
    %s2093 = scalar_lea.sflag [#allocation7], 1
    %2094 = vsyncpa %s2093, 1

</llo_original>
